<compile_context>
chip_gen: v5e
topology: v5e:2x2
jax: 0.10.0
libtpu: 0.0.40
codegen_flags: <defaults>
</compile_context>

<pallas_src>
import jax
import jax.numpy as jnp
from jax.experimental import pallas as pl
from jax.experimental.pallas import tpu as pltpu


def _round_up(x, m):
    return ((x + m - 1) // m) * m


def _decoder_step_kernel(emb_ref, h_ref, enc_ref,
                         w1d_ref, w1e_ref, b1_ref, w2_ref,
                         wxa_ref, wxe_ref, whh_ref, bih_ref, bhh_ref,
                         wout_ref, bout_ref,
                         logp_ref, hnew_ref, attn_ref):
    bf16 = jnp.bfloat16
    emb = emb_ref[...].astype(bf16)            # (BT, E)
    h = h_ref[...]                             # (BT, H)  f32
    h_bf = h.astype(bf16)
    enc = enc_ref[...]                         # (S, BT, 2H)  bf16
    S, BT, twoH = enc.shape
    H = h.shape[-1]

    # ---- attention energies (energy1 weight pre-split; bf16 x bf16 -> f32) --
    dec_part = jnp.dot(h_bf, w1d_ref[...],
                       preferred_element_type=jnp.float32)                      # (BT, H)
    enc_part = jnp.dot(enc.reshape(S * BT, twoH), w1e_ref[...],
                       preferred_element_type=jnp.float32)                      # (S*BT, H)
    e1 = jnp.maximum(
        enc_part.reshape(S, BT, H) + dec_part[None] + b1_ref[...], 0.0)         # (S, BT, H)

    # energy2 as a lane reduce against the weight row (bias dropped: a scalar
    # shift is softmax-invariant).
    scores = jnp.sum(e1 * w2_ref[...], axis=-1, keepdims=True)                  # (S, BT, 1)

    # ---- softmax over the sequence dim (PyTorch Softmax(dim=0)), exact ------
    m = jnp.max(scores, axis=0, keepdims=True)                                  # (1, BT, 1)
    ex = jnp.exp(scores - m)
    inv = 1.0 / jnp.sum(ex, axis=0, keepdims=True)                              # exact, tiny
    attn = ex * inv                                                              # (S, BT, 1)

    # ---- attention-weighted sum of encoder states (the bmm), f32 accumulate -
    attn_out = jnp.sum(attn * enc, axis=0)                                       # (BT, 2H) f32

    # ---- GRU cell, gates packed r|z|n along lanes: 3 matmuls total ----------
    gi = (jnp.dot(attn_out.astype(bf16), wxa_ref[...],
                  preferred_element_type=jnp.float32)
          + jnp.dot(emb, wxe_ref[...], preferred_element_type=jnp.float32)
          + bih_ref[...])                                                         # (BT, 3H)
    gh = (jnp.dot(h_bf, whh_ref[...], preferred_element_type=jnp.float32)
          + bhh_ref[...])                                                         # (BT, 3H)

    r = jax.nn.sigmoid(gi[:, :H] + gh[:, :H])
    z = jax.nn.sigmoid(gi[:, H:2 * H] + gh[:, H:2 * H])
    n = jnp.tanh(gi[:, 2 * H:] + r * gh[:, 2 * H:])
    h_new = (1.0 - z) * n + z * h                                                 # (BT, H) f32

    # ---- output projection (vocab padded to 128 lanes, pad bias = -1e30) ----
    logits = jnp.dot(h_new.astype(bf16), wout_ref[...],
                     preferred_element_type=jnp.float32) + bout_ref[...]          # (BT, Op)
    lmax = jnp.max(logits, axis=-1, keepdims=True)
    lse = jnp.log(jnp.sum(jnp.exp(logits - lmax), axis=-1, keepdims=True)) + lmax

    logp_ref[...] = (logits - lse).astype(logp_ref.dtype)
    hnew_ref[...] = h_new.astype(hnew_ref.dtype)
    attn_ref[...] = attn.astype(attn_ref.dtype)


def decoder_attention_gru(params, decoder_input, decoder_hidden_state,
                          encoder_hidden_states):
    """decoder_input: (1, B) int32, decoder_hidden_state: (1, B, H),
    encoder_hidden_states: (S, B, 2H).  Returns (log_probs (1,B,O),
    new_hidden (1,B,H), attention (S,B,1))."""
    S, B, twoH = encoder_hidden_states.shape
    H = twoH // 2
    E = params["embedding"].shape[1]
    O = params["linear_w"].shape[0]
    Op = _round_up(O, 128)
    f32, bf16 = jnp.float32, jnp.bfloat16

    # Embedding lookup (gather) is glue, done in plain JAX.
    # TODO(synk): nn.Dropout is identity here (inference mode); training-mode
    # dropout is not implemented.
    emb = jnp.take(params["embedding"], decoder_input[0], axis=0).astype(f32)   # (B, E)
    h0 = decoder_hidden_state[0].astype(f32)                                    # (B, H)
    enc = encoder_hidden_states
    if enc.dtype != bf16:
        # In production the producer should hand enc over in bf16 already;
        # this cast is one cheap extra pass at these sizes.
        enc = enc.astype(bf16)                                                   # (S, B, 2H)

    # ---- batch tile: 16-sublane aligned (bf16 enc block), VMEM-budget capped,
    #      and >= 2 tiles once B >= 16 so both v7x TensorCores get work.
    BT = _round_up(B, 16)
    if B >= 16:
        BT = min(BT, _round_up(pl.cdiv(B, 2), 16))
    per_row = (2 * S * twoH * 2        # enc block, bf16, double-buffered
               + S * twoH * 4          # f32 attention-weighted product temp
               + 2 * S * H * 4         # energy1 activations
               + (E + 6 * H + 2 * Op + S) * 4)
    bt_vmem = max(16, ((16 * 1024 * 1024) // per_row) // 16 * 16)
    BT = max(16, min(BT, bt_vmem, 256))
    num_bt = pl.cdiv(B, BT)

    # ---- pre-transposed / pre-split / pre-packed weights (kernel: x @ W only)
    w1 = params["energy1_w"]                            # (H, 3H); input = [dec_hidden | enc]
    w1d_T = w1[:, :H].T.astype(bf16)                    # (H, H)    decoder-hidden part
    w1e_T = w1[:, H:].T.astype(bf16)                    # (2H, H)   encoder part
    b1 = params["energy1_b"].astype(f32)[None, :]       # (1, H)
    w2row = params["energy2_w"].astype(f32)             # (1, H); energy2_b dropped

    wih = params["gru_w_ih"]                            # (3H, 2H+E), gate rows r|z|n
    wxa = wih[:, :2 * H].T.astype(bf16)                 # (2H, 3H)  attention-input part
    wxe = wih[:, 2 * H:].T.astype(bf16)                 # (E, 3H)   embedding-input part
    whh = params["gru_w_hh"].T.astype(bf16)             # (H, 3H)
    bih = params["gru_b_ih"].astype(f32)[None, :]       # (1, 3H)
    bhh = params["gru_b_hh"].astype(f32)[None, :]       # (1, 3H)

    wout_T = jnp.zeros((H, Op), bf16).at[:, :O].set(params["linear_w"].T.astype(bf16))
    bout = jnp.full((1, Op), -1e30, f32).at[0, :O].set(params["linear_b"].astype(f32))

    def full(arr):
        nd = arr.ndim
        return pl.BlockSpec(arr.shape, lambda bt, _nd=nd: (0,) * _nd)

    logp, hnew, attn = pl.pallas_call(
        _decoder_step_kernel,
        out_shape=(
            jax.ShapeDtypeStruct((B, Op), jnp.float32),
            jax.ShapeDtypeStruct((B, H), jnp.float32),
            jax.ShapeDtypeStruct((S, B, 1), jnp.float32),
        ),
        grid=(num_bt,),
        in_specs=[
            pl.BlockSpec((BT, E), lambda bt: (bt, 0)),
            pl.BlockSpec((BT, H), lambda bt: (bt, 0)),
            pl.BlockSpec((S, BT, twoH), lambda bt: (0, bt, 0)),
            full(w1d_T), full(w1e_T), full(b1), full(w2row),
            full(wxa), full(wxe), full(whh), full(bih), full(bhh),
            full(wout_T), full(bout),
        ],
        out_specs=(
            pl.BlockSpec((BT, Op), lambda bt: (bt, 0)),
            pl.BlockSpec((BT, H), lambda bt: (bt, 0)),
            pl.BlockSpec((S, BT, 1), lambda bt: (0, bt, 0)),
        ),
        compiler_params=pltpu.CompilerParams(
            dimension_semantics=("parallel",),
            vmem_limit_bytes=48 * 1024 * 1024),
    )(emb, h0, enc,
      w1d_T, w1e_T, b1, w2row,
      wxa, wxe, whh, bih, bhh,
      wout_T, bout)

    output = logp[None, :, :O]        # (1, B, O)
    h_new = hnew[None]                # (1, B, H)
    attention = attn                  # (S, B, 1)
    return output, h_new, attention


def reference_forward(params, decoder_input, h0, enc):
    """Pure-JAX (f32) mirror of the PyTorch forward (eval mode)."""
    S = enc.shape[0]
    H = h0.shape[2]
    emb = jnp.take(params["embedding"], decoder_input, axis=0)                  # (1, B, E)
    h_exp = jnp.broadcast_to(h0, (S,) + h0.shape[1:])                           # (S, B, H)
    hidden_state = jnp.concatenate([h_exp, enc], axis=2)                        # (S, B, 3H)
    e1 = jax.nn.relu(hidden_state @ params["energy1_w"].T + params["energy1_b"])
    score = e1 @ params["energy2_w"].T + params["energy2_b"]                    # (S, B, 1)
    attn = jax.nn.softmax(score, axis=0)                                        # (S, B, 1)
    attn_out = jnp.einsum("sbo,sbh->boh", attn, enc)                            # (B, 1, 2H)
    rnn_in = jnp.concatenate([jnp.transpose(attn_out, (1, 0, 2)), emb], axis=2)  # (1,B,2H+E)

    x = rnn_in[0]
    h = h0[0]
    gi = x @ params["gru_w_ih"].T + params["gru_b_ih"]
    gh = h @ params["gru_w_hh"].T + params["gru_b_hh"]
    r = jax.nn.sigmoid(gi[:, 0:H] + gh[:, 0:H])
    z = jax.nn.sigmoid(gi[:, H:2 * H] + gh[:, H:2 * H])
    n = jnp.tanh(gi[:, 2 * H:3 * H] + r * gh[:, 2 * H:3 * H])
    h_new = (1.0 - z) * n + z * h

    out = h_new[None] @ params["linear_w"].T + params["linear_b"]               # (1, B, O)
    out = jax.nn.log_softmax(out, axis=2)
    return out, h_new[None], attn


if __name__ == "__main__":
    O, E, H, B, S = 40, 16, 32, 2, 8

    key = jax.random.PRNGKey(0)
    ks = jax.random.split(key, 16)

    def uni(k, shape, fan_in):
        bound = 1.0 / float(fan_in) ** 0.5
        return jax.random.uniform(k, shape, jnp.float32, -bound, bound)

    params = {
        "embedding": jax.random.normal(ks[0], (O, E), jnp.float32),
        "energy1_w": uni(ks[1], (H, 3 * H), 3 * H),
        "energy1_b": uni(ks[2], (H,), 3 * H),
        "energy2_w": uni(ks[3], (1, H), H),
        "energy2_b": uni(ks[4], (1,), H),
        "gru_w_ih": uni(ks[5], (3 * H, 2 * H + E), H),
        "gru_w_hh": uni(ks[6], (3 * H, H), H),
        "gru_b_ih": uni(ks[7], (3 * H,), H),
        "gru_b_hh": uni(ks[8], (3 * H,), H),
        "linear_w": uni(ks[9], (O, H), H),
        "linear_b": uni(ks[10], (O,), H),
    }

    decoder_input = jax.random.randint(ks[11], (1, B), 0, O, dtype=jnp.int32)
    decoder_hidden = jax.random.normal(ks[12], (1, B, H), jnp.float32)
    encoder_hidden = jax.random.normal(ks[13], (S, B, 2 * H), jnp.float32)

    out, h_new, attn = decoder_attention_gru(
        params, decoder_input, decoder_hidden, encoder_hidden)
    jax.block_until_ready((out, h_new, attn))

    ref_out, ref_h, ref_attn = reference_forward(
        params, decoder_input, decoder_hidden, encoder_hidden)

    assert out.shape == (1, B, O) and h_new.shape == (1, B, H) and attn.shape == (S, B, 1)
    # Attention weights are exactly normalized (exact f32 divide in-kernel).
    assert jnp.allclose(jnp.sum(attn, axis=0), 1.0, atol=1e-5)
    # Tolerances account for bf16 MXU operands (f32 accumulation) in the
    # kernel vs. the pure-f32 reference.
    assert jnp.allclose(attn, ref_attn, atol=2e-2, rtol=2e-2)
    assert jnp.allclose(h_new, ref_h, atol=5e-2, rtol=2e-2)
    assert jnp.allclose(out, ref_out, atol=5e-2, rtol=2e-2)

    print("KERNEL_OK")
</pallas_src>

<mosaic_0001>
module attributes {stable_mosaic.version = 11 : i64} {
  func.func @_decoder_step_kernel(%arg0: i32, %arg1: memref<16x16xf32, #tpu.memory_space<vmem>>, %arg2: memref<16x32xf32, #tpu.memory_space<vmem>>, %arg3: memref<8x16x64xbf16, #tpu.memory_space<vmem>>, %arg4: memref<32x32xbf16, #tpu.memory_space<vmem>>, %arg5: memref<64x32xbf16, #tpu.memory_space<vmem>>, %arg6: memref<1x32xf32, #tpu.memory_space<vmem>>, %arg7: memref<1x32xf32, #tpu.memory_space<vmem>>, %arg8: memref<64x96xbf16, #tpu.memory_space<vmem>>, %arg9: memref<16x96xbf16, #tpu.memory_space<vmem>>, %arg10: memref<32x96xbf16, #tpu.memory_space<vmem>>, %arg11: memref<1x96xf32, #tpu.memory_space<vmem>>, %arg12: memref<1x96xf32, #tpu.memory_space<vmem>>, %arg13: memref<32x128xbf16, #tpu.memory_space<vmem>>, %arg14: memref<1x128xf32, #tpu.memory_space<vmem>>, %arg15: memref<16x128xf32, #tpu.memory_space<vmem>>, %arg16: memref<16x32xf32, #tpu.memory_space<vmem>>, %arg17: memref<8x16x1xf32, #tpu.memory_space<vmem>>) attributes {dimension_semantics = [#tpu.dimension_semantics<parallel>], iteration_bounds = array<i64: 1>, scalar_prefetch = 0 : i64, scratch_operands = 0 : i64, tpu.core_type = #tpu.core_type<tc>, window_params = [{transform_indices = @transform_0, window_bounds = array<i64: 16, 16>}, {transform_indices = @transform_1, window_bounds = array<i64: 16, 32>}, {transform_indices = @transform_2, window_bounds = array<i64: 8, 16, 64>}, {pipeline_mode = #tpu.pipeline_mode<synchronous>, transform_indices = @transform_3, window_bounds = array<i64: 32, 32>}, {pipeline_mode = #tpu.pipeline_mode<synchronous>, transform_indices = @transform_4, window_bounds = array<i64: 64, 32>}, {pipeline_mode = #tpu.pipeline_mode<synchronous>, transform_indices = @transform_5, window_bounds = array<i64: 1, 32>}, {pipeline_mode = #tpu.pipeline_mode<synchronous>, transform_indices = @transform_6, window_bounds = array<i64: 1, 32>}, {pipeline_mode = #tpu.pipeline_mode<synchronous>, transform_indices = @transform_7, window_bounds = array<i64: 64, 96>}, {pipeline_mode = #tpu.pipeline_mode<synchronous>, transform_indices = @transform_8, window_bounds = array<i64: 16, 96>}, {pipeline_mode = #tpu.pipeline_mode<synchronous>, transform_indices = @transform_9, window_bounds = array<i64: 32, 96>}, {pipeline_mode = #tpu.pipeline_mode<synchronous>, transform_indices = @transform_10, window_bounds = array<i64: 1, 96>}, {pipeline_mode = #tpu.pipeline_mode<synchronous>, transform_indices = @transform_11, window_bounds = array<i64: 1, 96>}, {pipeline_mode = #tpu.pipeline_mode<synchronous>, transform_indices = @transform_12, window_bounds = array<i64: 32, 128>}, {pipeline_mode = #tpu.pipeline_mode<synchronous>, transform_indices = @transform_13, window_bounds = array<i64: 1, 128>}, {transform_indices = @transform_14, window_bounds = array<i64: 16, 128>}, {transform_indices = @transform_15, window_bounds = array<i64: 16, 32>}, {transform_indices = @transform_16, window_bounds = array<i64: 8, 16, 1>}]} {
    %c0 = arith.constant 0 : index
    %c0_0 = arith.constant 0 : index
    %0 = vector.load %arg1[%c0, %c0_0] : memref<16x16xf32, #tpu.memory_space<vmem>>, vector<16x16xf32>
    %1 = arith.truncf %0 : vector<16x16xf32> to vector<16x16xbf16>
    %c0_1 = arith.constant 0 : index
    %c0_2 = arith.constant 0 : index
    %2 = vector.load %arg2[%c0_1, %c0_2] : memref<16x32xf32, #tpu.memory_space<vmem>>, vector<16x32xf32>
    %3 = arith.truncf %2 : vector<16x32xf32> to vector<16x32xbf16>
    %c0_3 = arith.constant 0 : index
    %c0_4 = arith.constant 0 : index
    %c0_5 = arith.constant 0 : index
    %4 = vector.load %arg3[%c0_3, %c0_4, %c0_5] : memref<8x16x64xbf16, #tpu.memory_space<vmem>>, vector<8x16x64xbf16>
    %c0_6 = arith.constant 0 : index
    %c0_7 = arith.constant 0 : index
    %5 = vector.load %arg4[%c0_6, %c0_7] : memref<32x32xbf16, #tpu.memory_space<vmem>>, vector<32x32xbf16>
    %cst = arith.constant dense<0.000000e+00> : vector<16x32xf32>
    %6 = tpu.matmul %3, %5, %cst {dimension_numbers = #tpu.dot_dimension_numbers<[1], [0], [0], [1], [0, 0, 1, 1], [], []>} : vector<16x32xbf16>, vector<32x32xbf16>, vector<16x32xf32> -> vector<16x32xf32>
    %7 = vector.shape_cast %4 : vector<8x16x64xbf16> to vector<128x64xbf16>
    %c0_8 = arith.constant 0 : index
    %c0_9 = arith.constant 0 : index
    %8 = vector.load %arg5[%c0_8, %c0_9] : memref<64x32xbf16, #tpu.memory_space<vmem>>, vector<64x32xbf16>
    %cst_10 = arith.constant dense<0.000000e+00> : vector<128x32xf32>
    %9 = tpu.matmul %7, %8, %cst_10 {dimension_numbers = #tpu.dot_dimension_numbers<[1], [0], [0], [1], [0, 0, 1, 1], [], []>} : vector<128x64xbf16>, vector<64x32xbf16>, vector<128x32xf32> -> vector<128x32xf32>
    %10 = vector.shape_cast %9 : vector<128x32xf32> to vector<8x16x32xf32>
    %11 = vector.shape_cast %6 : vector<16x32xf32> to vector<1x16x32xf32>
    %12 = vector.broadcast %11 : vector<1x16x32xf32> to vector<8x16x32xf32>
    %13 = arith.addf %10, %12 : vector<8x16x32xf32>
    %c0_11 = arith.constant 0 : index
    %c0_12 = arith.constant 0 : index
    %14 = vector.load %arg6[%c0_11, %c0_12] : memref<1x32xf32, #tpu.memory_space<vmem>>, vector<1x32xf32>
    %15 = vector.shape_cast %14 : vector<1x32xf32> to vector<1x1x32xf32>
    %16 = vector.broadcast %15 : vector<1x1x32xf32> to vector<8x16x32xf32>
    %17 = arith.addf %13, %16 : vector<8x16x32xf32>
    %cst_13 = arith.constant 0.000000e+00 : f32
    %18 = vector.broadcast %cst_13 : f32 to vector<8x16x32xf32>
    %19 = arith.maximumf %17, %18 : vector<8x16x32xf32>
    %c0_14 = arith.constant 0 : index
    %c0_15 = arith.constant 0 : index
    %20 = vector.load %arg7[%c0_14, %c0_15] : memref<1x32xf32, #tpu.memory_space<vmem>>, vector<1x32xf32>
    %21 = vector.shape_cast %20 : vector<1x32xf32> to vector<1x1x32xf32>
    %22 = vector.broadcast %21 : vector<1x1x32xf32> to vector<8x16x32xf32>
    %23 = arith.mulf %19, %22 : vector<8x16x32xf32>
    %cst_16 = arith.constant dense<0.000000e+00> : vector<8x16xf32>
    %24 = vector.multi_reduction <add>, %23, %cst_16 [2] : vector<8x16x32xf32> to vector<8x16xf32>
    %25 = vector.shape_cast %24 : vector<8x16xf32> to vector<8x16x1xf32>
    %cst_17 = arith.constant dense<0xFF800000> : vector<16x1xf32>
    %26 = vector.multi_reduction <maximumf>, %25, %cst_17 [0] : vector<8x16x1xf32> to vector<16x1xf32>
    %27 = vector.shape_cast %26 : vector<16x1xf32> to vector<1x16x1xf32>
    %28 = vector.broadcast %27 : vector<1x16x1xf32> to vector<8x16x1xf32>
    %29 = arith.subf %25, %28 : vector<8x16x1xf32>
    %30 = math.exp %29 : vector<8x16x1xf32>
    %cst_18 = arith.constant dense<0.000000e+00> : vector<16x1xf32>
    %31 = vector.multi_reduction <add>, %30, %cst_18 [0] : vector<8x16x1xf32> to vector<16x1xf32>
    %32 = vector.shape_cast %31 : vector<16x1xf32> to vector<1x16x1xf32>
    %cst_19 = arith.constant 1.000000e+00 : f32
    %33 = vector.broadcast %cst_19 : f32 to vector<1x16x1xf32>
    %34 = arith.divf %33, %32 : vector<1x16x1xf32>
    %35 = vector.broadcast %34 : vector<1x16x1xf32> to vector<8x16x1xf32>
    %36 = arith.mulf %30, %35 : vector<8x16x1xf32>
    %37 = arith.extf %4 : vector<8x16x64xbf16> to vector<8x16x64xf32>
    %38 = vector.broadcast %36 : vector<8x16x1xf32> to vector<8x16x64xf32>
    %39 = arith.mulf %38, %37 : vector<8x16x64xf32>
    %cst_20 = arith.constant dense<0.000000e+00> : vector<16x64xf32>
    %40 = vector.multi_reduction <add>, %39, %cst_20 [0] : vector<8x16x64xf32> to vector<16x64xf32>
    %41 = arith.truncf %40 : vector<16x64xf32> to vector<16x64xbf16>
    %c0_21 = arith.constant 0 : index
    %c0_22 = arith.constant 0 : index
    %42 = vector.load %arg8[%c0_21, %c0_22] : memref<64x96xbf16, #tpu.memory_space<vmem>>, vector<64x96xbf16>
    %cst_23 = arith.constant dense<0.000000e+00> : vector<16x96xf32>
    %43 = tpu.matmul %41, %42, %cst_23 {dimension_numbers = #tpu.dot_dimension_numbers<[1], [0], [0], [1], [0, 0, 1, 1], [], []>} : vector<16x64xbf16>, vector<64x96xbf16>, vector<16x96xf32> -> vector<16x96xf32>
    %c0_24 = arith.constant 0 : index
    %c0_25 = arith.constant 0 : index
    %44 = vector.load %arg9[%c0_24, %c0_25] : memref<16x96xbf16, #tpu.memory_space<vmem>>, vector<16x96xbf16>
    %cst_26 = arith.constant dense<0.000000e+00> : vector<16x96xf32>
    %45 = tpu.matmul %1, %44, %cst_26 {dimension_numbers = #tpu.dot_dimension_numbers<[1], [0], [0], [1], [0, 0, 1, 1], [], []>} : vector<16x16xbf16>, vector<16x96xbf16>, vector<16x96xf32> -> vector<16x96xf32>
    %46 = arith.addf %43, %45 : vector<16x96xf32>
    %c0_27 = arith.constant 0 : index
    %c0_28 = arith.constant 0 : index
    %47 = vector.load %arg11[%c0_27, %c0_28] : memref<1x96xf32, #tpu.memory_space<vmem>>, vector<1x96xf32>
    %48 = vector.broadcast %47 : vector<1x96xf32> to vector<16x96xf32>
    %49 = arith.addf %46, %48 : vector<16x96xf32>
    %c0_29 = arith.constant 0 : index
    %c0_30 = arith.constant 0 : index
    %50 = vector.load %arg10[%c0_29, %c0_30] : memref<32x96xbf16, #tpu.memory_space<vmem>>, vector<32x96xbf16>
    %cst_31 = arith.constant dense<0.000000e+00> : vector<16x96xf32>
    %51 = tpu.matmul %3, %50, %cst_31 {dimension_numbers = #tpu.dot_dimension_numbers<[1], [0], [0], [1], [0, 0, 1, 1], [], []>} : vector<16x32xbf16>, vector<32x96xbf16>, vector<16x96xf32> -> vector<16x96xf32>
    %c0_32 = arith.constant 0 : index
    %c0_33 = arith.constant 0 : index
    %52 = vector.load %arg12[%c0_32, %c0_33] : memref<1x96xf32, #tpu.memory_space<vmem>>, vector<1x96xf32>
    %53 = vector.broadcast %52 : vector<1x96xf32> to vector<16x96xf32>
    %54 = arith.addf %51, %53 : vector<16x96xf32>
    %55 = vector.extract_strided_slice %49 {offsets = [0, 0], sizes = [16, 32], strides = [1, 1]} : vector<16x96xf32> to vector<16x32xf32>
    %56 = vector.extract_strided_slice %54 {offsets = [0, 0], sizes = [16, 32], strides = [1, 1]} : vector<16x96xf32> to vector<16x32xf32>
    %57 = arith.addf %55, %56 : vector<16x32xf32>
    %58 = arith.negf %57 : vector<16x32xf32>
    %59 = math.exp %58 : vector<16x32xf32>
    %cst_34 = arith.constant 1.000000e+00 : f32
    %60 = vector.broadcast %cst_34 : f32 to vector<16x32xf32>
    %61 = arith.addf %60, %59 : vector<16x32xf32>
    %62 = arith.divf %60, %61 : vector<16x32xf32>
    %63 = vector.extract_strided_slice %49 {offsets = [0, 32], sizes = [16, 32], strides = [1, 1]} : vector<16x96xf32> to vector<16x32xf32>
    %64 = vector.extract_strided_slice %54 {offsets = [0, 32], sizes = [16, 32], strides = [1, 1]} : vector<16x96xf32> to vector<16x32xf32>
    %65 = arith.addf %63, %64 : vector<16x32xf32>
    %66 = arith.negf %65 : vector<16x32xf32>
    %67 = math.exp %66 : vector<16x32xf32>
    %cst_35 = arith.constant 1.000000e+00 : f32
    %68 = vector.broadcast %cst_35 : f32 to vector<16x32xf32>
    %69 = arith.addf %68, %67 : vector<16x32xf32>
    %70 = arith.divf %68, %69 : vector<16x32xf32>
    %71 = vector.extract_strided_slice %49 {offsets = [0, 64], sizes = [16, 32], strides = [1, 1]} : vector<16x96xf32> to vector<16x32xf32>
    %72 = vector.extract_strided_slice %54 {offsets = [0, 64], sizes = [16, 32], strides = [1, 1]} : vector<16x96xf32> to vector<16x32xf32>
    %73 = arith.mulf %62, %72 : vector<16x32xf32>
    %74 = arith.addf %71, %73 : vector<16x32xf32>
    %75 = math.tanh %74 : vector<16x32xf32>
    %cst_36 = arith.constant 1.000000e+00 : f32
    %76 = vector.broadcast %cst_36 : f32 to vector<16x32xf32>
    %77 = arith.subf %76, %70 : vector<16x32xf32>
    %78 = arith.mulf %77, %75 : vector<16x32xf32>
    %79 = arith.mulf %70, %2 : vector<16x32xf32>
    %80 = arith.addf %78, %79 : vector<16x32xf32>
    %81 = arith.truncf %80 : vector<16x32xf32> to vector<16x32xbf16>
    %c0_37 = arith.constant 0 : index
    %c0_38 = arith.constant 0 : index
    %82 = vector.load %arg13[%c0_37, %c0_38] : memref<32x128xbf16, #tpu.memory_space<vmem>>, vector<32x128xbf16>
    %cst_39 = arith.constant dense<0.000000e+00> : vector<16x128xf32>
    %83 = tpu.matmul %81, %82, %cst_39 {dimension_numbers = #tpu.dot_dimension_numbers<[1], [0], [0], [1], [0, 0, 1, 1], [], []>} : vector<16x32xbf16>, vector<32x128xbf16>, vector<16x128xf32> -> vector<16x128xf32>
    %c0_40 = arith.constant 0 : index
    %c0_41 = arith.constant 0 : index
    %84 = vector.load %arg14[%c0_40, %c0_41] : memref<1x128xf32, #tpu.memory_space<vmem>>, vector<1x128xf32>
    %85 = vector.broadcast %84 : vector<1x128xf32> to vector<16x128xf32>
    %86 = arith.addf %83, %85 : vector<16x128xf32>
    %cst_42 = arith.constant dense<0xFF800000> : vector<16xf32>
    %87 = vector.multi_reduction <maximumf>, %86, %cst_42 [1] : vector<16x128xf32> to vector<16xf32>
    %88 = vector.shape_cast %87 : vector<16xf32> to vector<16x1xf32>
    %89 = vector.broadcast %88 : vector<16x1xf32> to vector<16x128xf32>
    %90 = arith.subf %86, %89 : vector<16x128xf32>
    %91 = math.exp %90 : vector<16x128xf32>
    %cst_43 = arith.constant dense<0.000000e+00> : vector<16xf32>
    %92 = vector.multi_reduction <add>, %91, %cst_43 [1] : vector<16x128xf32> to vector<16xf32>
    %93 = vector.shape_cast %92 : vector<16xf32> to vector<16x1xf32>
    %94 = math.log %93 : vector<16x1xf32>
    %95 = arith.addf %94, %88 : vector<16x1xf32>
    %96 = vector.broadcast %95 : vector<16x1xf32> to vector<16x128xf32>
    %97 = arith.subf %86, %96 : vector<16x128xf32>
    %c0_44 = arith.constant 0 : index
    %c0_45 = arith.constant 0 : index
    %98 = vector.load %arg15[%c0_44, %c0_45] : memref<16x128xf32, #tpu.memory_space<vmem>>, vector<16x128xf32>
    tpu.vector_store %arg15[%c0_44, %c0_45], %97 {strides = array<i32>} : memref<16x128xf32, #tpu.memory_space<vmem>>, vector<16x128xf32>,
    %c0_46 = arith.constant 0 : index
    %c0_47 = arith.constant 0 : index
    %99 = vector.load %arg16[%c0_46, %c0_47] : memref<16x32xf32, #tpu.memory_space<vmem>>, vector<16x32xf32>
    tpu.vector_store %arg16[%c0_46, %c0_47], %80 {strides = array<i32>} : memref<16x32xf32, #tpu.memory_space<vmem>>, vector<16x32xf32>,
    %c0_48 = arith.constant 0 : index
    %c0_49 = arith.constant 0 : index
    %c0_50 = arith.constant 0 : index
    %100 = vector.load %arg17[%c0_48, %c0_49, %c0_50] : memref<8x16x1xf32, #tpu.memory_space<vmem>>, vector<8x16x1xf32>
    tpu.vector_store %arg17[%c0_48, %c0_49, %c0_50], %36 {strides = array<i32>} : memref<8x16x1xf32, #tpu.memory_space<vmem>>, vector<8x16x1xf32>,
    return
  }
  func.func @transform_0(%arg0: i32) -> (i32, i32) {
    %c0_i32 = arith.constant 0 : i32
    %c0_i32_0 = arith.constant 0 : i32
    return %arg0, %c0_i32 : i32, i32
  }
  func.func @transform_1(%arg0: i32) -> (i32, i32) {
    %c0_i32 = arith.constant 0 : i32
    %c0_i32_0 = arith.constant 0 : i32
    return %arg0, %c0_i32 : i32, i32
  }
  func.func @transform_2(%arg0: i32) -> (i32, i32, i32) {
    %c0_i32 = arith.constant 0 : i32
    %c0_i32_0 = arith.constant 0 : i32
    %c0_i32_1 = arith.constant 0 : i32
    return %c0_i32, %arg0, %c0_i32_0 : i32, i32, i32
  }
  func.func @transform_3(%arg0: i32) -> (i32, i32) {
    %c0_i32 = arith.constant 0 : i32
    %c0_i32_0 = arith.constant 0 : i32
    %c0_i32_1 = arith.constant 0 : i32
    return %c0_i32, %c0_i32_0 : i32, i32
  }
  func.func @transform_4(%arg0: i32) -> (i32, i32) {
    %c0_i32 = arith.constant 0 : i32
    %c0_i32_0 = arith.constant 0 : i32
    %c0_i32_1 = arith.constant 0 : i32
    return %c0_i32, %c0_i32_0 : i32, i32
  }
  func.func @transform_5(%arg0: i32) -> (i32, i32) {
    %c0_i32 = arith.constant 0 : i32
    %c0_i32_0 = arith.constant 0 : i32
    %c0_i32_1 = arith.constant 0 : i32
    return %c0_i32, %c0_i32_0 : i32, i32
  }
  func.func @transform_6(%arg0: i32) -> (i32, i32) {
    %c0_i32 = arith.constant 0 : i32
    %c0_i32_0 = arith.constant 0 : i32
    %c0_i32_1 = arith.constant 0 : i32
    return %c0_i32, %c0_i32_0 : i32, i32
  }
  func.func @transform_7(%arg0: i32) -> (i32, i32) {
    %c0_i32 = arith.constant 0 : i32
    %c0_i32_0 = arith.constant 0 : i32
    %c0_i32_1 = arith.constant 0 : i32
    return %c0_i32, %c0_i32_0 : i32, i32
  }
  func.func @transform_8(%arg0: i32) -> (i32, i32) {
    %c0_i32 = arith.constant 0 : i32
    %c0_i32_0 = arith.constant 0 : i32
    %c0_i32_1 = arith.constant 0 : i32
    return %c0_i32, %c0_i32_0 : i32, i32
  }
  func.func @transform_9(%arg0: i32) -> (i32, i32) {
    %c0_i32 = arith.constant 0 : i32
    %c0_i32_0 = arith.constant 0 : i32
    %c0_i32_1 = arith.constant 0 : i32
    return %c0_i32, %c0_i32_0 : i32, i32
  }
  func.func @transform_10(%arg0: i32) -> (i32, i32) {
    %c0_i32 = arith.constant 0 : i32
    %c0_i32_0 = arith.constant 0 : i32
    %c0_i32_1 = arith.constant 0 : i32
    return %c0_i32, %c0_i32_0 : i32, i32
  }
  func.func @transform_11(%arg0: i32) -> (i32, i32) {
    %c0_i32 = arith.constant 0 : i32
    %c0_i32_0 = arith.constant 0 : i32
    %c0_i32_1 = arith.constant 0 : i32
    return %c0_i32, %c0_i32_0 : i32, i32
  }
  func.func @transform_12(%arg0: i32) -> (i32, i32) {
    %c0_i32 = arith.constant 0 : i32
    %c0_i32_0 = arith.constant 0 : i32
    %c0_i32_1 = arith.constant 0 : i32
    return %c0_i32, %c0_i32_0 : i32, i32
  }
  func.func @transform_13(%arg0: i32) -> (i32, i32) {
    %c0_i32 = arith.constant 0 : i32
    %c0_i32_0 = arith.constant 0 : i32
    %c0_i32_1 = arith.constant 0 : i32
    return %c0_i32, %c0_i32_0 : i32, i32
  }
  func.func @transform_14(%arg0: i32) -> (i32, i32) {
    %c0_i32 = arith.constant 0 : i32
    %c0_i32_0 = arith.constant 0 : i32
    return %arg0, %c0_i32 : i32, i32
  }
  func.func @transform_15(%arg0: i32) -> (i32, i32) {
    %c0_i32 = arith.constant 0 : i32
    %c0_i32_0 = arith.constant 0 : i32
    return %arg0, %c0_i32 : i32, i32
  }
  func.func @transform_16(%arg0: i32) -> (i32, i32, i32) {
    %c0_i32 = arith.constant 0 : i32
    %c0_i32_0 = arith.constant 0 : i32
    %c0_i32_1 = arith.constant 0 : i32
    return %c0_i32, %arg0, %c0_i32_0 : i32, i32, i32
  }
}

</mosaic_0001>

<llo_original>
// kernel: tpu_custom_call.1
$region0: #{tpu_custom_call.1}
  #allocation0 [shape = 'u32[]', space=smem, size = 0x4, offset = 0x4, fixed_abs, tag = 'smem constant byte address 0x4 - core index']
  #allocation1 [shape = 'u32[72,128]{1,0:T(1,128)}', space=vmem, size = 0x9000, scoped, tag = 'internal scratch']
  #allocation14 [shape = 's32[]', space=sflag, size = 0x4, offset = 0, fixed_abs, tag = 'sflag constant byte address 0x0 - dummy sync flag']
  %s0 = inlined_call_operand.vmem [shape: f32[2,16], index: 0, kind: input, shape index: {}]
  %s1 = inlined_call_operand.vmem [shape: f32[2,32], index: 1, kind: input, shape index: {}]
  %s2 = inlined_call_operand.hbm [shape: bf16[8,2,64], index: 2, kind: input, shape index: {}]
  %s3 = inlined_call_operand.vmem [shape: bf16[32,32], index: 3, kind: input, shape index: {}]
  %s4 = inlined_call_operand.vmem [shape: bf16[64,32], index: 4, kind: input, shape index: {}]
  %s5 = inlined_call_operand.vmem [shape: f32[1,32], index: 5, kind: input, shape index: {}]
  %s6 = inlined_call_operand.vmem [shape: f32[1,32], index: 6, kind: input, shape index: {}]
  %s7 = inlined_call_operand.vmem [shape: bf16[64,96], index: 7, kind: input, shape index: {}]
  %s8 = inlined_call_operand.hbm [shape: bf16[16,96], index: 8, kind: input, shape index: {}]
  %s9 = inlined_call_operand.hbm [shape: bf16[32,96], index: 9, kind: input, shape index: {}]
  %s10 = inlined_call_operand.vmem [shape: f32[1,96], index: 10, kind: input, shape index: {}]
  %s11 = inlined_call_operand.vmem [shape: f32[1,96], index: 11, kind: input, shape index: {}]
  %s12 = inlined_call_operand.hbm [shape: bf16[32,128], index: 12, kind: input, shape index: {}]
  %s13 = inlined_call_operand.vmem [shape: f32[1,128], index: 13, kind: input, shape index: {}]
  %s14 = inlined_call_operand.hbm [shape: f32[2,128], index: 14, kind: output, shape index: {0}]
  %s15 = inlined_call_operand.hbm [shape: f32[2,32], index: 15, kind: output, shape index: {1}]
  %s16 = inlined_call_operand.vmem [shape: f32[8,2,1], index: 16, kind: output, shape index: {2}]
  %17 = xla_tuple %s14, %s15, %s16
  %s18 = sld [smem:[#allocation0]]
  $region135: #{tpu_custom_call.1} parent=0
    _
  %s20 = ssub.s32 1, %s18
  %s21 = scalar_select 0, %s20, %s18
  $region1: #{tpu_custom_call.1} parent=0
    #allocation2 [shape = 'u8[32768]{0}', space=vmem, size = 0x8000, scoped, tag = 'input window, operand 2, single buffered']
    #allocation3 [shape = 's32[1]{0}', space=sflag, size = 0x4, scoped, tag = 'scoped memory for tpu_custom_call.1']
    #allocation4 [shape = 's32[1]{0}', space=sflag, size = 0x4, scoped, tag = 'scoped memory for tpu_custom_call.1']
    #allocation5 [shape = 'u8[4096]{0}', space=vmem, size = 0x1000, scoped, tag = 'input window, operand 8, single buffered']
    #allocation6 [shape = 's32[1]{0}', space=sflag, size = 0x4, scoped, tag = 'scoped memory for tpu_custom_call.1']
    #allocation7 [shape = 'u8[8192]{0}', space=vmem, size = 0x2000, scoped, tag = 'input window, operand 9, single buffered']
    #allocation8 [shape = 'u8[8192]{0}', space=vmem, size = 0x2000, scoped, tag = 'input window, operand 12, single buffered']
    #allocation9 [shape = 's32[1]{0}', space=sflag, size = 0x4, scoped, tag = 'scoped memory for tpu_custom_call.1']
    #allocation10 [shape = 'u8[8192]{0}', space=vmem, size = 0x2000, scoped, tag = 'output window, operand 0, single buffered']
    #allocation11 [shape = 'u8[8192]{0}', space=vmem, size = 0x2000, scoped, tag = 'output window, operand 1, single buffered']
    #allocation12 [shape = 's32[1]{0}', space=sflag, size = 0x4, scoped, tag = 'scoped memory for tpu_custom_call.1']
    #allocation13 [shape = 'u8[65536]{0}', space=vmem, size = 0x10000, scoped, tag = 'output window, operand 2, single buffered']
    %22 = vsyncpa [#allocation3], 0
    %23 = vsyncpa [#allocation6], 0
    %24 = vsyncpa [#allocation9], 0
    %25 = vsyncpa [#allocation4], 0
    %26 = vsyncpa [#allocation12], 0
    // Predicated region
    $region2: #{tpu_custom_call.1} parent=1 // pred_check
      _
    $region3: #{tpu_custom_call.1} parent=1 // pred_check_branch
      %28 = sbr.rel (0) target = $region5
    $region4: #{tpu_custom_call.1} parent=1 // pred_region
      _
    $region5: #{tpu_custom_call.1} parent=1 // pred_fallthru
      _
    // Predicated region
    $region6: #{tpu_custom_call.1} parent=1 // pred_check
      _
    $region7: #{tpu_custom_call.1} parent=1 // pred_check_branch
      %30 = sbr.rel (0) target = $region9
    $region8: #{tpu_custom_call.1} parent=1 // pred_region
      _
    $region9: #{tpu_custom_call.1} parent=1 // pred_fallthru
      _
    // Predicated region
    $region10: #{tpu_custom_call.1} parent=1 // pred_check
      _
    $region11: #{tpu_custom_call.1} parent=1 // pred_check_branch
      %32 = sbr.rel (0) target = $region13
    $region12: #{tpu_custom_call.1} parent=1 // pred_region
      #allocation15 [shape = 'u32[6]{0}', space=smem, size = 0x18, scoped, tag = 'DMA stride descriptor']
      %34 = vsyncadd [#allocation3], 896
      %s36 = sshll.u32 1, 14
      %s37 = sxor.u32 4294967295, %s36
      %s39 = sld [smem:[#allocation0]]
      %s40 = sadd.s32 2, %s39
      %s42 = sshll.u32 7, 26
      %s43 = sxor.u32 4294967295, %s42
      %s44 = sand.u32 0, %s43
      %s45 = sshll.u32 %s40, 26
      %s46 = sor.u32 %s44, %s45
      %s47 = sshll.u32 %s2, 4
      %s48 = int_to_ptr.hbm [resolvable:$true] %s47
      %s49 = sshll.u32 [#allocation2], 4
      %s50 = int_to_ptr.vmem [resolvable:$true] %s49
      %56 = sst [smem:[#allocation15]] 16
      %s57 = scalar_lea.smem [#allocation15], 1
      %58 = sst [smem:[%s57]] 128
      %s59 = scalar_lea.smem [#allocation15], 2
      %60 = sst [smem:[%s59]] 1
      %s61 = scalar_lea.smem [#allocation15], 3
      %62 = sst [smem:[%s61]] 16
      %s63 = scalar_lea.smem [#allocation15], 4
      %64 = sst [smem:[%s63]] 16
      %s65 = scalar_lea.smem [#allocation15], 5
      %66 = sst [smem:[%s65]] 1
      %68 = dma.general %s48, 128, %s50, [#allocation3], [#allocation14], [#allocation15], %s46, 0
    $region13: #{tpu_custom_call.1} parent=1 // pred_fallthru
      _
    // Predicated region
    $region14: #{tpu_custom_call.1} parent=1 // pred_check
      _
    $region15: #{tpu_custom_call.1} parent=1 // pred_check_branch
      %70 = sbr.rel (0) target = $region17
    $region16: #{tpu_custom_call.1} parent=1 // pred_region
      _
    $region17: #{tpu_custom_call.1} parent=1 // pred_fallthru
      _
    // Predicated region
    $region18: #{tpu_custom_call.1} parent=1 // pred_check
      _
    $region19: #{tpu_custom_call.1} parent=1 // pred_check_branch
      %72 = sbr.rel (0) target = $region21
    $region20: #{tpu_custom_call.1} parent=1 // pred_region
      _
    $region21: #{tpu_custom_call.1} parent=1 // pred_fallthru
      _
    // Predicated region
    $region22: #{tpu_custom_call.1} parent=1 // pred_check
      _
    $region23: #{tpu_custom_call.1} parent=1 // pred_check_branch
      %74 = sbr.rel (0) target = $region25
    $region24: #{tpu_custom_call.1} parent=1 // pred_region
      _
    $region25: #{tpu_custom_call.1} parent=1 // pred_fallthru
      _
    // Predicated region
    $region26: #{tpu_custom_call.1} parent=1 // pred_check
      _
    $region27: #{tpu_custom_call.1} parent=1 // pred_check_branch
      %76 = sbr.rel (0) target = $region29
    $region28: #{tpu_custom_call.1} parent=1 // pred_region
      _
    $region29: #{tpu_custom_call.1} parent=1 // pred_fallthru
      _
    // Predicated region
    $region30: #{tpu_custom_call.1} parent=1 // pred_check
      _
    $region31: #{tpu_custom_call.1} parent=1 // pred_check_branch
      %78 = sbr.rel (0) target = $region33
    $region32: #{tpu_custom_call.1} parent=1 // pred_region
      _
    $region33: #{tpu_custom_call.1} parent=1 // pred_fallthru
      _
    // Predicated region
    $region34: #{tpu_custom_call.1} parent=1 // pred_check
      _
    $region35: #{tpu_custom_call.1} parent=1 // pred_check_branch
      %80 = sbr.rel (0) target = $region37
    $region36: #{tpu_custom_call.1} parent=1 // pred_region
      %82 = vsyncadd [#allocation6], 0
      %s83 = sshll.u32 %s8, 4
      %s84 = int_to_ptr.hbm [resolvable:$true] %s83
      %s85 = sshll.u32 [#allocation5], 4
      %s86 = int_to_ptr.vmem [resolvable:$true] %s85
      %91 = dma.hbm_to_vmem [thread:$0]  %s84, 128, %s86, [#allocation6], 64, 64, 4
    $region37: #{tpu_custom_call.1} parent=1 // pred_fallthru
      _
    // Predicated region
    $region38: #{tpu_custom_call.1} parent=1 // pred_check
      _
    $region39: #{tpu_custom_call.1} parent=1 // pred_check_branch
      %93 = sbr.rel (0) target = $region41
    $region40: #{tpu_custom_call.1} parent=1 // pred_region
      %95 = vsyncadd [#allocation6], 0
      %s96 = sshll.u32 %s9, 4
      %s97 = int_to_ptr.hbm [resolvable:$true] %s96
      %s98 = sshll.u32 [#allocation7], 4
      %s99 = int_to_ptr.vmem [resolvable:$true] %s98
      %104 = dma.hbm_to_vmem [thread:$0]  %s97, 256, %s99, [#allocation6], 64, 64, 4
    $region41: #{tpu_custom_call.1} parent=1 // pred_fallthru
      _
    // Predicated region
    $region42: #{tpu_custom_call.1} parent=1 // pred_check
      _
    $region43: #{tpu_custom_call.1} parent=1 // pred_check_branch
      %106 = sbr.rel (0) target = $region45
    $region44: #{tpu_custom_call.1} parent=1 // pred_region
      _
    $region45: #{tpu_custom_call.1} parent=1 // pred_fallthru
      _
    // Predicated region
    $region46: #{tpu_custom_call.1} parent=1 // pred_check
      _
    $region47: #{tpu_custom_call.1} parent=1 // pred_check_branch
      %108 = sbr.rel (0) target = $region49
    $region48: #{tpu_custom_call.1} parent=1 // pred_region
      _
    $region49: #{tpu_custom_call.1} parent=1 // pred_fallthru
      _
    // Predicated region
    $region50: #{tpu_custom_call.1} parent=1 // pred_check
      _
    $region51: #{tpu_custom_call.1} parent=1 // pred_check_branch
      %110 = sbr.rel (0) target = $region53
    $region52: #{tpu_custom_call.1} parent=1 // pred_region
      %112 = vsyncadd [#allocation9], 0
      %s113 = sshll.u32 %s12, 4
      %s114 = int_to_ptr.hbm [resolvable:$true] %s113
      %s115 = sshll.u32 [#allocation8], 4
      %s116 = int_to_ptr.vmem [resolvable:$true] %s115
      %121 = dma.hbm_to_vmem [thread:$0]  %s114, 256, %s116, [#allocation9], 64, 64, 4
    $region53: #{tpu_custom_call.1} parent=1 // pred_fallthru
      _
    // Predicated region
    $region54: #{tpu_custom_call.1} parent=1 // pred_check
      _
    $region55: #{tpu_custom_call.1} parent=1 // pred_check_branch
      %123 = sbr.rel (0) target = $region57
    $region56: #{tpu_custom_call.1} parent=1 // pred_region
      _
    $region57: #{tpu_custom_call.1} parent=1 // pred_fallthru
      _
    // Predicated region
    $region58: #{tpu_custom_call.1} parent=1 // pred_check
      _
    $region59: #{tpu_custom_call.1} parent=1 // pred_check_branch
      %125 = sbr.rel (0) target = $region61
    $region60: #{tpu_custom_call.1} parent=1 // pred_region
      %127 = dma.done [#allocation3], 1024
    $region61: #{tpu_custom_call.1} parent=1 // pred_fallthru
      _
    // Predicated region
    $region62: #{tpu_custom_call.1} parent=1 // pred_check
      _
    $region63: #{tpu_custom_call.1} parent=1 // pred_check_branch
      %129 = sbr.rel (0) target = $region65
    $region64: #{tpu_custom_call.1} parent=1 // pred_region
      %131 = dma.done [#allocation6], 128
    $region65: #{tpu_custom_call.1} parent=1 // pred_fallthru
      _
    // Predicated region
    $region66: #{tpu_custom_call.1} parent=1 // pred_check
      _
    $region67: #{tpu_custom_call.1} parent=1 // pred_check_branch
      %133 = sbr.rel (0) target = $region69
    $region68: #{tpu_custom_call.1} parent=1 // pred_region
      %135 = dma.done [#allocation6], 256
    $region69: #{tpu_custom_call.1} parent=1 // pred_fallthru
      _
    // Predicated region
    $region70: #{tpu_custom_call.1} parent=1 // pred_check
      _
    $region71: #{tpu_custom_call.1} parent=1 // pred_check_branch
      %137 = sbr.rel (0) target = $region73
    $region72: #{tpu_custom_call.1} parent=1 // pred_region
      %139 = dma.done [#allocation9], 256
    $region73: #{tpu_custom_call.1} parent=1 // pred_fallthru
      _
    %v141 = vld [vmem:[%s0] sm:$0xff]
    %v142 = vld [vmem:[%s0 + $0x8] sm:$0xff]
    %v143 = vpack.c.bf16 %v142, %v141
    %v144 = vld [vmem:[%s1] sm:$0xff]
    %v145 = vld [vmem:[%s1 + $0x8] sm:$0xff]
    %v146 = vpack.c.bf16 %v145, %v144
    %v147 = vld [vmem:[#allocation2] sm:$0x1]
    %v148 = vld [vmem:[#allocation2 + $0x1] sm:$0x1]
    %v149 = vld [vmem:[#allocation2 + $0x2] sm:$0x1]
    %v150 = vld [vmem:[#allocation2 + $0x3] sm:$0x1]
    %v151 = vld [vmem:[#allocation2 + $0x4] sm:$0x1]
    %v152 = vld [vmem:[#allocation2 + $0x5] sm:$0x1]
    %v153 = vld [vmem:[#allocation2 + $0x6] sm:$0x1]
    %v154 = vld [vmem:[#allocation2 + $0x7] sm:$0x1]
    %v155 = vld [vmem:[#allocation2 + $0x8] sm:$0x1]
    %v156 = vld [vmem:[#allocation2 + $0x9] sm:$0x1]
    %v157 = vld [vmem:[#allocation2 + $0xa] sm:$0x1]
    %v158 = vld [vmem:[#allocation2 + $0xb] sm:$0x1]
    %v159 = vld [vmem:[#allocation2 + $0xc] sm:$0x1]
    %v160 = vld [vmem:[#allocation2 + $0xd] sm:$0x1]
    %v161 = vld [vmem:[#allocation2 + $0xe] sm:$0x1]
    %v162 = vld [vmem:[#allocation2 + $0xf] sm:$0x1]
    %v163 = vld [vmem:[#allocation2 + $0x10] sm:$0x1]
    %v164 = vld [vmem:[#allocation2 + $0x11] sm:$0x1]
    %v165 = vld [vmem:[#allocation2 + $0x12] sm:$0x1]
    %v166 = vld [vmem:[#allocation2 + $0x13] sm:$0x1]
    %v167 = vld [vmem:[#allocation2 + $0x14] sm:$0x1]
    %v168 = vld [vmem:[#allocation2 + $0x15] sm:$0x1]
    %v169 = vld [vmem:[#allocation2 + $0x16] sm:$0x1]
    %v170 = vld [vmem:[#allocation2 + $0x17] sm:$0x1]
    %v171 = vld [vmem:[#allocation2 + $0x18] sm:$0x1]
    %v172 = vld [vmem:[#allocation2 + $0x19] sm:$0x1]
    %v173 = vld [vmem:[#allocation2 + $0x1a] sm:$0x1]
    %v174 = vld [vmem:[#allocation2 + $0x1b] sm:$0x1]
    %v175 = vld [vmem:[#allocation2 + $0x1c] sm:$0x1]
    %v176 = vld [vmem:[#allocation2 + $0x1d] sm:$0x1]
    %v177 = vld [vmem:[#allocation2 + $0x1e] sm:$0x1]
    %v178 = vld [vmem:[#allocation2 + $0x1f] sm:$0x1]
    %v179 = vld [vmem:[#allocation2 + $0x20] sm:$0x1]
    %v180 = vld [vmem:[#allocation2 + $0x21] sm:$0x1]
    %v181 = vld [vmem:[#allocation2 + $0x22] sm:$0x1]
    %v182 = vld [vmem:[#allocation2 + $0x23] sm:$0x1]
    %v183 = vld [vmem:[#allocation2 + $0x24] sm:$0x1]
    %v184 = vld [vmem:[#allocation2 + $0x25] sm:$0x1]
    %v185 = vld [vmem:[#allocation2 + $0x26] sm:$0x1]
    %v186 = vld [vmem:[#allocation2 + $0x27] sm:$0x1]
    %v187 = vld [vmem:[#allocation2 + $0x28] sm:$0x1]
    %v188 = vld [vmem:[#allocation2 + $0x29] sm:$0x1]
    %v189 = vld [vmem:[#allocation2 + $0x2a] sm:$0x1]
    %v190 = vld [vmem:[#allocation2 + $0x2b] sm:$0x1]
    %v191 = vld [vmem:[#allocation2 + $0x2c] sm:$0x1]
    %v192 = vld [vmem:[#allocation2 + $0x2d] sm:$0x1]
    %v193 = vld [vmem:[#allocation2 + $0x2e] sm:$0x1]
    %v194 = vld [vmem:[#allocation2 + $0x2f] sm:$0x1]
    %v195 = vld [vmem:[#allocation2 + $0x30] sm:$0x1]
    %v196 = vld [vmem:[#allocation2 + $0x31] sm:$0x1]
    %v197 = vld [vmem:[#allocation2 + $0x32] sm:$0x1]
    %v198 = vld [vmem:[#allocation2 + $0x33] sm:$0x1]
    %v199 = vld [vmem:[#allocation2 + $0x34] sm:$0x1]
    %v200 = vld [vmem:[#allocation2 + $0x35] sm:$0x1]
    %v201 = vld [vmem:[#allocation2 + $0x36] sm:$0x1]
    %v202 = vld [vmem:[#allocation2 + $0x37] sm:$0x1]
    %v203 = vld [vmem:[#allocation2 + $0x38] sm:$0x1]
    %v204 = vld [vmem:[#allocation2 + $0x39] sm:$0x1]
    %v205 = vld [vmem:[#allocation2 + $0x3a] sm:$0x1]
    %v206 = vld [vmem:[#allocation2 + $0x3b] sm:$0x1]
    %v207 = vld [vmem:[#allocation2 + $0x3c] sm:$0x1]
    %v208 = vld [vmem:[#allocation2 + $0x3d] sm:$0x1]
    %v209 = vld [vmem:[#allocation2 + $0x3e] sm:$0x1]
    %v210 = vld [vmem:[#allocation2 + $0x3f] sm:$0x1]
    %v211 = vld [vmem:[%s3] sm:$0xf]
    %v212 = vld [vmem:[%s3 + $0x4] sm:$0xf]
    %v213 = vld [vmem:[%s3 + $0x8] sm:$0xf]
    %v214 = vld [vmem:[%s3 + $0xc] sm:$0xf]
    %v219 = vunpack.c.l.b16 %v211
    %v220 = vunpack.c.l.b16 %v212
    %v221 = vunpack.c.l.b16 %v213
    %v222 = vunpack.c.l.b16 %v214
    %v223 = vpack.c.b16 %v220, %v219
    %v224 = vpack.c.b16 %v222, %v221
    %vm227 = vcmask 261120
    %v229 = vsel %vm227, %v146, 0
    %231 = vmatpush.bf16.msra.mxu0 0
    %232 = vmatpush.bf16.msra.mxu0 0
    %233 = vmatpush.bf16.msra.mxu0 0
    %234 = vmatpush.bf16.msra.mxu0 0
    %235 = vmatpush.bf16.msra.mxu0 0
    %236 = vmatpush.bf16.msra.mxu0 0
    %237 = vmatpush.bf16.msra.mxu0 %v224
    %238 = vmatpush.bf16.msra.mxu0 %v223
    %239 = vmatmul.bf16.gmra.mxu0 %v229
    %v240 = vpop.f32.mrf.mxu0
    %v241 = vadd.f32 0.0, %v240
    %v242 = vpop.f32.mrf.mxu0
    %v243 = vadd.f32 0.0, %v242
    %244 = vdwg.mxu0
    %v245 = vld [vmem:[%s4] sm:$0xf]
    %v246 = vld [vmem:[%s4 + $0x4] sm:$0xf]
    %v247 = vld [vmem:[%s4 + $0x8] sm:$0xf]
    %v248 = vld [vmem:[%s4 + $0xc] sm:$0xf]
    %v249 = vld [vmem:[%s4 + $0x10] sm:$0xf]
    %v250 = vld [vmem:[%s4 + $0x14] sm:$0xf]
    %v251 = vld [vmem:[%s4 + $0x18] sm:$0xf]
    %v252 = vld [vmem:[%s4 + $0x1c] sm:$0xf]
    %254 = vst [vmem:[#allocation1] ss:$9 sm:$0xff] %v147
    %s256 = scalar_lea.vmem [#allocation1], 1
    %257 = vst [vmem:[%s256] ss:$9 sm:$0xff] %v148
    %s259 = scalar_lea.vmem [#allocation1], 2
    %260 = vst [vmem:[%s259] ss:$9 sm:$0xff] %v149
    %s262 = scalar_lea.vmem [#allocation1], 3
    %263 = vst [vmem:[%s262] ss:$9 sm:$0xff] %v150
    %s265 = scalar_lea.vmem [#allocation1], 4
    %266 = vst [vmem:[%s265] ss:$9 sm:$0xff] %v151
    %s268 = scalar_lea.vmem [#allocation1], 5
    %269 = vst [vmem:[%s268] ss:$9 sm:$0xff] %v152
    %s271 = scalar_lea.vmem [#allocation1], 6
    %272 = vst [vmem:[%s271] ss:$9 sm:$0xff] %v153
    %s274 = scalar_lea.vmem [#allocation1], 7
    %275 = vst [vmem:[%s274] ss:$9 sm:$0xff] %v154
    %v276 = vld [vmem:[#allocation1] sm:$0xff]
    %278 = vst [vmem:[#allocation1] ss:$9 sm:$0xff] %v155
    %280 = vst [vmem:[%s256] ss:$9 sm:$0xff] %v156
    %282 = vst [vmem:[%s259] ss:$9 sm:$0xff] %v157
    %284 = vst [vmem:[%s262] ss:$9 sm:$0xff] %v158
    %286 = vst [vmem:[%s265] ss:$9 sm:$0xff] %v159
    %288 = vst [vmem:[%s268] ss:$9 sm:$0xff] %v160
    %290 = vst [vmem:[%s271] ss:$9 sm:$0xff] %v161
    %292 = vst [vmem:[%s274] ss:$9 sm:$0xff] %v162
    %v293 = vld [vmem:[#allocation1] sm:$0xff]
    %295 = vst [vmem:[#allocation1] ss:$9 sm:$0xff] %v163
    %297 = vst [vmem:[%s256] ss:$9 sm:$0xff] %v164
    %299 = vst [vmem:[%s259] ss:$9 sm:$0xff] %v165
    %301 = vst [vmem:[%s262] ss:$9 sm:$0xff] %v166
    %303 = vst [vmem:[%s265] ss:$9 sm:$0xff] %v167
    %305 = vst [vmem:[%s268] ss:$9 sm:$0xff] %v168
    %307 = vst [vmem:[%s271] ss:$9 sm:$0xff] %v169
    %309 = vst [vmem:[%s274] ss:$9 sm:$0xff] %v170
    %v310 = vld [vmem:[#allocation1] sm:$0xff]
    %312 = vst [vmem:[#allocation1] ss:$9 sm:$0xff] %v171
    %314 = vst [vmem:[%s256] ss:$9 sm:$0xff] %v172
    %316 = vst [vmem:[%s259] ss:$9 sm:$0xff] %v173
    %318 = vst [vmem:[%s262] ss:$9 sm:$0xff] %v174
    %320 = vst [vmem:[%s265] ss:$9 sm:$0xff] %v175
    %322 = vst [vmem:[%s268] ss:$9 sm:$0xff] %v176
    %324 = vst [vmem:[%s271] ss:$9 sm:$0xff] %v177
    %326 = vst [vmem:[%s274] ss:$9 sm:$0xff] %v178
    %v327 = vld [vmem:[#allocation1] sm:$0xff]
    %329 = vst [vmem:[#allocation1] ss:$9 sm:$0xff] %v179
    %331 = vst [vmem:[%s256] ss:$9 sm:$0xff] %v180
    %333 = vst [vmem:[%s259] ss:$9 sm:$0xff] %v181
    %335 = vst [vmem:[%s262] ss:$9 sm:$0xff] %v182
    %337 = vst [vmem:[%s265] ss:$9 sm:$0xff] %v183
    %339 = vst [vmem:[%s268] ss:$9 sm:$0xff] %v184
    %341 = vst [vmem:[%s271] ss:$9 sm:$0xff] %v185
    %343 = vst [vmem:[%s274] ss:$9 sm:$0xff] %v186
    %v344 = vld [vmem:[#allocation1] sm:$0xff]
    %346 = vst [vmem:[#allocation1] ss:$9 sm:$0xff] %v187
    %348 = vst [vmem:[%s256] ss:$9 sm:$0xff] %v188
    %350 = vst [vmem:[%s259] ss:$9 sm:$0xff] %v189
    %352 = vst [vmem:[%s262] ss:$9 sm:$0xff] %v190
    %354 = vst [vmem:[%s265] ss:$9 sm:$0xff] %v191
    %356 = vst [vmem:[%s268] ss:$9 sm:$0xff] %v192
    %358 = vst [vmem:[%s271] ss:$9 sm:$0xff] %v193
    %360 = vst [vmem:[%s274] ss:$9 sm:$0xff] %v194
    %v361 = vld [vmem:[#allocation1] sm:$0xff]
    %363 = vst [vmem:[#allocation1] ss:$9 sm:$0xff] %v195
    %365 = vst [vmem:[%s256] ss:$9 sm:$0xff] %v196
    %367 = vst [vmem:[%s259] ss:$9 sm:$0xff] %v197
    %369 = vst [vmem:[%s262] ss:$9 sm:$0xff] %v198
    %371 = vst [vmem:[%s265] ss:$9 sm:$0xff] %v199
    %373 = vst [vmem:[%s268] ss:$9 sm:$0xff] %v200
    %375 = vst [vmem:[%s271] ss:$9 sm:$0xff] %v201
    %377 = vst [vmem:[%s274] ss:$9 sm:$0xff] %v202
    %v378 = vld [vmem:[#allocation1] sm:$0xff]
    %380 = vst [vmem:[#allocation1] ss:$9 sm:$0xff] %v203
    %382 = vst [vmem:[%s256] ss:$9 sm:$0xff] %v204
    %384 = vst [vmem:[%s259] ss:$9 sm:$0xff] %v205
    %386 = vst [vmem:[%s262] ss:$9 sm:$0xff] %v206
    %388 = vst [vmem:[%s265] ss:$9 sm:$0xff] %v207
    %390 = vst [vmem:[%s268] ss:$9 sm:$0xff] %v208
    %392 = vst [vmem:[%s271] ss:$9 sm:$0xff] %v209
    %394 = vst [vmem:[%s274] ss:$9 sm:$0xff] %v210
    %v395 = vld [vmem:[#allocation1] sm:$0xff]
    %v404 = vunpack.c.l.b16 %v245
    %v405 = vunpack.c.l.b16 %v246
    %v406 = vunpack.c.l.b16 %v247
    %v407 = vunpack.c.l.b16 %v248
    %v408 = vunpack.c.l.b16 %v249
    %v409 = vunpack.c.l.b16 %v250
    %v410 = vunpack.c.l.b16 %v251
    %v411 = vunpack.c.l.b16 %v252
    %v412 = vpack.c.b16 %v405, %v404
    %v413 = vpack.c.b16 %v407, %v406
    %v414 = vpack.c.b16 %v409, %v408
    %v415 = vpack.c.b16 %v411, %v410
    %vm420 = vcmask 523264
    %v421 = vsel %vm420, %v276, 0
    %v423 = vsel %vm420, %v293, 0
    %v425 = vsel %vm420, %v310, 0
    %v427 = vsel %vm420, %v327, 0
    %v429 = vsel %vm420, %v344, 0
    %v431 = vsel %vm420, %v361, 0
    %v433 = vsel %vm420, %v378, 0
    %v435 = vsel %vm420, %v395, 0
    %437 = vmatpush.bf16.msra.mxu0 0
    %438 = vmatpush.bf16.msra.mxu0 0
    %439 = vmatpush.bf16.msra.mxu0 0
    %440 = vmatpush.bf16.msra.mxu0 0
    %441 = vmatpush.bf16.msra.mxu0 %v415
    %442 = vmatpush.bf16.msra.mxu0 %v414
    %443 = vmatpush.bf16.msra.mxu0 %v413
    %444 = vmatpush.bf16.msra.mxu0 %v412
    %445 = vmatmul.bf16.gmra.mxu0 %v421
    %v446 = vpop.f32.mrf.mxu0
    %v447 = vadd.f32 0.0, %v446
    %v448 = vpop.f32.mrf.mxu0
    %v449 = vadd.f32 0.0, %v448
    %450 = vmatmul.bf16.gmra.mxu0 %v423
    %v451 = vpop.f32.mrf.mxu0
    %v452 = vadd.f32 0.0, %v451
    %v453 = vpop.f32.mrf.mxu0
    %v454 = vadd.f32 0.0, %v453
    %455 = vmatmul.bf16.gmra.mxu0 %v425
    %v456 = vpop.f32.mrf.mxu0
    %v457 = vadd.f32 0.0, %v456
    %v458 = vpop.f32.mrf.mxu0
    %v459 = vadd.f32 0.0, %v458
    %460 = vmatmul.bf16.gmra.mxu0 %v427
    %v461 = vpop.f32.mrf.mxu0
    %v462 = vadd.f32 0.0, %v461
    %v463 = vpop.f32.mrf.mxu0
    %v464 = vadd.f32 0.0, %v463
    %465 = vmatmul.bf16.gmra.mxu0 %v429
    %v466 = vpop.f32.mrf.mxu0
    %v467 = vadd.f32 0.0, %v466
    %v468 = vpop.f32.mrf.mxu0
    %v469 = vadd.f32 0.0, %v468
    %470 = vmatmul.bf16.gmra.mxu0 %v431
    %v471 = vpop.f32.mrf.mxu0
    %v472 = vadd.f32 0.0, %v471
    %v473 = vpop.f32.mrf.mxu0
    %v474 = vadd.f32 0.0, %v473
    %475 = vmatmul.bf16.gmra.mxu0 %v433
    %v476 = vpop.f32.mrf.mxu0
    %v477 = vadd.f32 0.0, %v476
    %v478 = vpop.f32.mrf.mxu0
    %v479 = vadd.f32 0.0, %v478
    %480 = vmatmul.bf16.gmra.mxu0 %v435
    %v481 = vpop.f32.mrf.mxu0
    %v482 = vadd.f32 0.0, %v481
    %v483 = vpop.f32.mrf.mxu0
    %v484 = vadd.f32 0.0, %v483
    %485 = vdwg.mxu0
    %v486 = vadd.f32 %v447, %v241
    %v487 = vadd.f32 %v449, %v243
    %v488 = vadd.f32 %v452, %v241
    %v489 = vadd.f32 %v454, %v243
    %v490 = vadd.f32 %v457, %v241
    %v491 = vadd.f32 %v459, %v243
    %v492 = vadd.f32 %v462, %v241
    %v493 = vadd.f32 %v464, %v243
    %v494 = vadd.f32 %v467, %v241
    %v495 = vadd.f32 %v469, %v243
    %v496 = vadd.f32 %v472, %v241
    %v497 = vadd.f32 %v474, %v243
    %v498 = vadd.f32 %v477, %v241
    %v499 = vadd.f32 %v479, %v243
    %v500 = vadd.f32 %v482, %v241
    %v501 = vadd.f32 %v484, %v243
    %v502 = vld [vmem:[%s5] sm:$0x1]
    %v504 = vperm.slane %v502, 0
    %v506 = vadd.f32 %v486, %v504
    %v507 = vadd.f32 %v487, %v504
    %v508 = vadd.f32 %v488, %v504
    %v509 = vadd.f32 %v489, %v504
    %v510 = vadd.f32 %v490, %v504
    %v511 = vadd.f32 %v491, %v504
    %v512 = vadd.f32 %v492, %v504
    %v513 = vadd.f32 %v493, %v504
    %v514 = vadd.f32 %v494, %v504
    %v515 = vadd.f32 %v495, %v504
    %v516 = vadd.f32 %v496, %v504
    %v517 = vadd.f32 %v497, %v504
    %v518 = vadd.f32 %v498, %v504
    %v519 = vadd.f32 %v499, %v504
    %v520 = vadd.f32 %v500, %v504
    %v521 = vadd.f32 %v501, %v504
    %v522 = vmax.f32 %v506, 0.0
    %v523 = vmax.f32 %v507, 0.0
    %v524 = vmax.f32 %v508, 0.0
    %v525 = vmax.f32 %v509, 0.0
    %v526 = vmax.f32 %v510, 0.0
    %v527 = vmax.f32 %v511, 0.0
    %v528 = vmax.f32 %v512, 0.0
    %v529 = vmax.f32 %v513, 0.0
    %v530 = vmax.f32 %v514, 0.0
    %v531 = vmax.f32 %v515, 0.0
    %v532 = vmax.f32 %v516, 0.0
    %v533 = vmax.f32 %v517, 0.0
    %v534 = vmax.f32 %v518, 0.0
    %v535 = vmax.f32 %v519, 0.0
    %v536 = vmax.f32 %v520, 0.0
    %v537 = vmax.f32 %v521, 0.0
    %v538 = vld [vmem:[%s6] sm:$0x1]
    %v540 = vperm.slane %v538, 0
    %v542 = vmul.f32 %v522, %v540
    %v543 = vmul.f32 %v523, %v540
    %v544 = vmul.f32 %v524, %v540
    %v545 = vmul.f32 %v525, %v540
    %v546 = vmul.f32 %v526, %v540
    %v547 = vmul.f32 %v527, %v540
    %v548 = vmul.f32 %v528, %v540
    %v549 = vmul.f32 %v529, %v540
    %v550 = vmul.f32 %v530, %v540
    %v551 = vmul.f32 %v531, %v540
    %v552 = vmul.f32 %v532, %v540
    %v553 = vmul.f32 %v533, %v540
    %v554 = vmul.f32 %v534, %v540
    %v555 = vmul.f32 %v535, %v540
    %v556 = vmul.f32 %v536, %v540
    %v557 = vmul.f32 %v537, %v540
    %v558 = vsel %vm227, %v542, 0.0
    %559 = vadd.xlane.f32.xlu0 %v558
    %v560 = vpop.xlane.xlu0 %559
    %v561 = vsel %vm227, %v543, 0.0
    %562 = vadd.xlane.f32.xlu0 %v561
    %v563 = vpop.xlane.xlu0 %562
    %v564 = vsel %vm227, %v544, 0.0
    %565 = vadd.xlane.f32.xlu0 %v564
    %v566 = vpop.xlane.xlu0 %565
    %v567 = vsel %vm227, %v545, 0.0
    %568 = vadd.xlane.f32.xlu0 %v567
    %v569 = vpop.xlane.xlu0 %568
    %v570 = vsel %vm227, %v546, 0.0
    %571 = vadd.xlane.f32.xlu0 %v570
    %v572 = vpop.xlane.xlu0 %571
    %v573 = vsel %vm227, %v547, 0.0
    %574 = vadd.xlane.f32.xlu0 %v573
    %v575 = vpop.xlane.xlu0 %574
    %v576 = vsel %vm227, %v548, 0.0
    %577 = vadd.xlane.f32.xlu0 %v576
    %v578 = vpop.xlane.xlu0 %577
    %v579 = vsel %vm227, %v549, 0.0
    %580 = vadd.xlane.f32.xlu0 %v579
    %v581 = vpop.xlane.xlu0 %580
    %v582 = vsel %vm227, %v550, 0.0
    %583 = vadd.xlane.f32.xlu0 %v582
    %v584 = vpop.xlane.xlu0 %583
    %v585 = vsel %vm227, %v551, 0.0
    %586 = vadd.xlane.f32.xlu0 %v585
    %v587 = vpop.xlane.xlu0 %586
    %v588 = vsel %vm227, %v552, 0.0
    %589 = vadd.xlane.f32.xlu0 %v588
    %v590 = vpop.xlane.xlu0 %589
    %v591 = vsel %vm227, %v553, 0.0
    %592 = vadd.xlane.f32.xlu0 %v591
    %v593 = vpop.xlane.xlu0 %592
    %v594 = vsel %vm227, %v554, 0.0
    %595 = vadd.xlane.f32.xlu0 %v594
    %v596 = vpop.xlane.xlu0 %595
    %v597 = vsel %vm227, %v555, 0.0
    %598 = vadd.xlane.f32.xlu0 %v597
    %v599 = vpop.xlane.xlu0 %598
    %v600 = vsel %vm227, %v556, 0.0
    %601 = vadd.xlane.f32.xlu0 %v600
    %v602 = vpop.xlane.xlu0 %601
    %v603 = vsel %vm227, %v557, 0.0
    %604 = vadd.xlane.f32.xlu0 %v603
    %v605 = vpop.xlane.xlu0 %604
    %v606 = vmax.f32 %v560, %v572
    %v607 = vmax.f32 %v566, %v578
    %v608 = vmax.f32 %v606, %v584
    %v609 = vmax.f32 %v607, %v590
    %v610 = vmax.f32 %v608, %v596
    %v611 = vmax.f32 %v609, %v602
    %v612 = vmax.f32 %v610, %v611
    %v613 = vmax.f32 %v563, %v575
    %v614 = vmax.f32 %v569, %v581
    %v615 = vmax.f32 %v613, %v587
    %v616 = vmax.f32 %v614, %v593
    %v617 = vmax.f32 %v615, %v599
    %v618 = vmax.f32 %v616, %v605
    %v619 = vmax.f32 %v617, %v618
    %v620 = vsub.f32 %v560, %v612
    %v621 = vsub.f32 %v563, %v619
    %v622 = vsub.f32 %v566, %v612
    %v623 = vsub.f32 %v569, %v619
    %v624 = vsub.f32 %v572, %v612
    %v625 = vsub.f32 %v575, %v619
    %v626 = vsub.f32 %v578, %v612
    %v627 = vsub.f32 %v581, %v619
    %v628 = vsub.f32 %v584, %v612
    %v629 = vsub.f32 %v587, %v619
    %v630 = vsub.f32 %v590, %v612
    %v631 = vsub.f32 %v593, %v619
    %v632 = vsub.f32 %v596, %v612
    %v633 = vsub.f32 %v599, %v619
    %v634 = vsub.f32 %v602, %v612
    %v635 = vsub.f32 %v605, %v619
    %v636 = vmul.f32 %v620, 1.442695
    %v637 = vpow.pop %v636
    %v638 = vmul.f32 %v621, 1.442695
    %v639 = vpow.pop %v638
    %v640 = vmul.f32 %v622, 1.442695
    %v641 = vpow.pop %v640
    %v642 = vmul.f32 %v623, 1.442695
    %v643 = vpow.pop %v642
    %v644 = vmul.f32 %v624, 1.442695
    %v645 = vpow.pop %v644
    %v646 = vmul.f32 %v625, 1.442695
    %v647 = vpow.pop %v646
    %v648 = vmul.f32 %v626, 1.442695
    %v649 = vpow.pop %v648
    %v650 = vmul.f32 %v627, 1.442695
    %v651 = vpow.pop %v650
    %v652 = vmul.f32 %v628, 1.442695
    %v653 = vpow.pop %v652
    %v654 = vmul.f32 %v629, 1.442695
    %v655 = vpow.pop %v654
    %v656 = vmul.f32 %v630, 1.442695
    %v657 = vpow.pop %v656
    %v658 = vmul.f32 %v631, 1.442695
    %v659 = vpow.pop %v658
    %v660 = vmul.f32 %v632, 1.442695
    %v661 = vpow.pop %v660
    %v662 = vmul.f32 %v633, 1.442695
    %v663 = vpow.pop %v662
    %v664 = vmul.f32 %v634, 1.442695
    %v665 = vpow.pop %v664
    %v666 = vmul.f32 %v635, 1.442695
    %v667 = vpow.pop %v666
    %v668 = vadd.f32 %v637, %v641
    %v669 = vadd.f32 %v668, %v645
    %v670 = vadd.f32 %v669, %v649
    %v671 = vadd.f32 %v670, %v653
    %v672 = vadd.f32 %v671, %v657
    %v673 = vadd.f32 %v672, %v661
    %v674 = vadd.f32 %v673, %v665
    %v675 = vadd.f32 %v639, %v643
    %v676 = vadd.f32 %v675, %v647
    %v677 = vadd.f32 %v676, %v651
    %v678 = vadd.f32 %v677, %v655
    %v679 = vadd.f32 %v678, %v659
    %v680 = vadd.f32 %v679, %v663
    %v681 = vadd.f32 %v680, %v667
    %v682 = vrcp.pop %v674
    %v683 = vmul.f32 %v674, %v682
    %v684 = vsub.f32 1.0, %v683
    %v685 = vmul.f32 %v682, %v684
    %v686 = vadd.f32 %v682, %v685
    %vm687 = vweird.f32 %v674
    %vm688 = vweird.f32 %v682
    %vm689 = vmor %vm687, %vm688
    %v690 = vsel %vm689, %v682, %v686
    %v691 = vand.u32 2147483647, %v674
    %vm692 = vcmp.eq.f32.partialorder %v691, 8.507059e+37
    %v693 = vand.u32 %v674, 2147483648
    %v694 = vor.u32 1.1754944e-38, %v693
    %v695 = vsel %vm692, %v694, %v690
    %v696 = vmul.f32 1.0, %v695
    %v697 = vrcp.pop %v681
    %v698 = vmul.f32 %v681, %v697
    %v699 = vsub.f32 1.0, %v698
    %v700 = vmul.f32 %v697, %v699
    %v701 = vadd.f32 %v697, %v700
    %vm702 = vweird.f32 %v681
    %vm703 = vweird.f32 %v697
    %vm704 = vmor %vm702, %vm703
    %v705 = vsel %vm704, %v697, %v701
    %v706 = vand.u32 2147483647, %v681
    %vm707 = vcmp.eq.f32.partialorder %v706, 8.507059e+37
    %v708 = vand.u32 %v681, 2147483648
    %v709 = vor.u32 1.1754944e-38, %v708
    %v710 = vsel %vm707, %v709, %v705
    %v711 = vmul.f32 1.0, %v710
    %v712 = vmul.f32 %v637, %v696
    %v713 = vmul.f32 %v639, %v711
    %v714 = vmul.f32 %v641, %v696
    %v715 = vmul.f32 %v643, %v711
    %v716 = vmul.f32 %v645, %v696
    %v717 = vmul.f32 %v647, %v711
    %v718 = vmul.f32 %v649, %v696
    %v719 = vmul.f32 %v651, %v711
    %v720 = vmul.f32 %v653, %v696
    %v721 = vmul.f32 %v655, %v711
    %v722 = vmul.f32 %v657, %v696
    %v723 = vmul.f32 %v659, %v711
    %v724 = vmul.f32 %v661, %v696
    %v725 = vmul.f32 %v663, %v711
    %v726 = vmul.f32 %v665, %v696
    %v727 = vmul.f32 %v667, %v711
    %v728 = vunpack.c.l.bf16 %v147
    %v729 = vunpack.c.l.bf16 %v148
    %v730 = vunpack.c.l.bf16 %v149
    %v731 = vunpack.c.l.bf16 %v150
    %v732 = vunpack.c.l.bf16 %v151
    %v733 = vunpack.c.l.bf16 %v152
    %v734 = vunpack.c.l.bf16 %v153
    %v735 = vunpack.c.l.bf16 %v154
    %v736 = vunpack.c.l.bf16 %v155
    %v737 = vunpack.c.l.bf16 %v156
    %v738 = vunpack.c.l.bf16 %v157
    %v739 = vunpack.c.l.bf16 %v158
    %v740 = vunpack.c.l.bf16 %v159
    %v741 = vunpack.c.l.bf16 %v160
    %v742 = vunpack.c.l.bf16 %v161
    %v743 = vunpack.c.l.bf16 %v162
    %v744 = vunpack.c.l.bf16 %v163
    %v745 = vunpack.c.l.bf16 %v164
    %v746 = vunpack.c.l.bf16 %v165
    %v747 = vunpack.c.l.bf16 %v166
    %v748 = vunpack.c.l.bf16 %v167
    %v749 = vunpack.c.l.bf16 %v168
    %v750 = vunpack.c.l.bf16 %v169
    %v751 = vunpack.c.l.bf16 %v170
    %v752 = vunpack.c.l.bf16 %v171
    %v753 = vunpack.c.l.bf16 %v172
    %v754 = vunpack.c.l.bf16 %v173
    %v755 = vunpack.c.l.bf16 %v174
    %v756 = vunpack.c.l.bf16 %v175
    %v757 = vunpack.c.l.bf16 %v176
    %v758 = vunpack.c.l.bf16 %v177
    %v759 = vunpack.c.l.bf16 %v178
    %v760 = vunpack.c.l.bf16 %v179
    %v761 = vunpack.c.l.bf16 %v180
    %v762 = vunpack.c.l.bf16 %v181
    %v763 = vunpack.c.l.bf16 %v182
    %v764 = vunpack.c.l.bf16 %v183
    %v765 = vunpack.c.l.bf16 %v184
    %v766 = vunpack.c.l.bf16 %v185
    %v767 = vunpack.c.l.bf16 %v186
    %v768 = vunpack.c.l.bf16 %v187
    %v769 = vunpack.c.l.bf16 %v188
    %v770 = vunpack.c.l.bf16 %v189
    %v771 = vunpack.c.l.bf16 %v190
    %v772 = vunpack.c.l.bf16 %v191
    %v773 = vunpack.c.l.bf16 %v192
    %v774 = vunpack.c.l.bf16 %v193
    %v775 = vunpack.c.l.bf16 %v194
    %v776 = vunpack.c.l.bf16 %v195
    %v777 = vunpack.c.l.bf16 %v196
    %v778 = vunpack.c.l.bf16 %v197
    %v779 = vunpack.c.l.bf16 %v198
    %v780 = vunpack.c.l.bf16 %v199
    %v781 = vunpack.c.l.bf16 %v200
    %v782 = vunpack.c.l.bf16 %v201
    %v783 = vunpack.c.l.bf16 %v202
    %v784 = vunpack.c.l.bf16 %v203
    %v785 = vunpack.c.l.bf16 %v204
    %v786 = vunpack.c.l.bf16 %v205
    %v787 = vunpack.c.l.bf16 %v206
    %v788 = vunpack.c.l.bf16 %v207
    %v789 = vunpack.c.l.bf16 %v208
    %v790 = vunpack.c.l.bf16 %v209
    %v791 = vunpack.c.l.bf16 %v210
    %856 = vst [vmem:[#allocation1] ss:$4 sm:$0xff] %v728
    %s857 = scalar_lea.vmem [#allocation1], 1
    %858 = vst [vmem:[%s857] ss:$4 sm:$0xff] %v729
    %s859 = scalar_lea.vmem [#allocation1], 2
    %860 = vst [vmem:[%s859] ss:$4 sm:$0xff] %v730
    %s861 = scalar_lea.vmem [#allocation1], 3
    %862 = vst [vmem:[%s861] ss:$4 sm:$0xff] %v731
    %s863 = scalar_lea.vmem [#allocation1], 32
    %864 = vst [vmem:[%s863] ss:$4 sm:$0xff] %v732
    %s865 = scalar_lea.vmem [#allocation1], 33
    %866 = vst [vmem:[%s865] ss:$4 sm:$0xff] %v733
    %s867 = scalar_lea.vmem [#allocation1], 34
    %868 = vst [vmem:[%s867] ss:$4 sm:$0xff] %v734
    %s869 = scalar_lea.vmem [#allocation1], 35
    %870 = vst [vmem:[%s869] ss:$4 sm:$0xff] %v735
    %v871 = vld.sshfl [vmem:[#allocation1] sm:$0xff pattern:$0x73625140]
    %v872 = vld.sshfl [vmem:[#allocation1 + $0x20] sm:$0xff pattern:$0x73625140]
    %873 = vst [vmem:[#allocation1] ss:$4 sm:$0xff] %v736
    %874 = vst [vmem:[%s857] ss:$4 sm:$0xff] %v737
    %875 = vst [vmem:[%s859] ss:$4 sm:$0xff] %v738
    %876 = vst [vmem:[%s861] ss:$4 sm:$0xff] %v739
    %877 = vst [vmem:[%s863] ss:$4 sm:$0xff] %v740
    %878 = vst [vmem:[%s865] ss:$4 sm:$0xff] %v741
    %879 = vst [vmem:[%s867] ss:$4 sm:$0xff] %v742
    %880 = vst [vmem:[%s869] ss:$4 sm:$0xff] %v743
    %v881 = vld.sshfl [vmem:[#allocation1] sm:$0xff pattern:$0x73625140]
    %v882 = vld.sshfl [vmem:[#allocation1 + $0x20] sm:$0xff pattern:$0x73625140]
    %883 = vst [vmem:[#allocation1] ss:$4 sm:$0xff] %v744
    %884 = vst [vmem:[%s857] ss:$4 sm:$0xff] %v745
    %885 = vst [vmem:[%s859] ss:$4 sm:$0xff] %v746
    %886 = vst [vmem:[%s861] ss:$4 sm:$0xff] %v747
    %887 = vst [vmem:[%s863] ss:$4 sm:$0xff] %v748
    %888 = vst [vmem:[%s865] ss:$4 sm:$0xff] %v749
    %889 = vst [vmem:[%s867] ss:$4 sm:$0xff] %v750
    %890 = vst [vmem:[%s869] ss:$4 sm:$0xff] %v751
    %v891 = vld.sshfl [vmem:[#allocation1] sm:$0xff pattern:$0x73625140]
    %v892 = vld.sshfl [vmem:[#allocation1 + $0x20] sm:$0xff pattern:$0x73625140]
    %893 = vst [vmem:[#allocation1] ss:$4 sm:$0xff] %v752
    %894 = vst [vmem:[%s857] ss:$4 sm:$0xff] %v753
    %895 = vst [vmem:[%s859] ss:$4 sm:$0xff] %v754
    %896 = vst [vmem:[%s861] ss:$4 sm:$0xff] %v755
    %897 = vst [vmem:[%s863] ss:$4 sm:$0xff] %v756
    %898 = vst [vmem:[%s865] ss:$4 sm:$0xff] %v757
    %899 = vst [vmem:[%s867] ss:$4 sm:$0xff] %v758
    %900 = vst [vmem:[%s869] ss:$4 sm:$0xff] %v759
    %v901 = vld.sshfl [vmem:[#allocation1] sm:$0xff pattern:$0x73625140]
    %v902 = vld.sshfl [vmem:[#allocation1 + $0x20] sm:$0xff pattern:$0x73625140]
    %903 = vst [vmem:[#allocation1] ss:$4 sm:$0xff] %v760
    %904 = vst [vmem:[%s857] ss:$4 sm:$0xff] %v761
    %905 = vst [vmem:[%s859] ss:$4 sm:$0xff] %v762
    %906 = vst [vmem:[%s861] ss:$4 sm:$0xff] %v763
    %907 = vst [vmem:[%s863] ss:$4 sm:$0xff] %v764
    %908 = vst [vmem:[%s865] ss:$4 sm:$0xff] %v765
    %909 = vst [vmem:[%s867] ss:$4 sm:$0xff] %v766
    %910 = vst [vmem:[%s869] ss:$4 sm:$0xff] %v767
    %v911 = vld.sshfl [vmem:[#allocation1] sm:$0xff pattern:$0x73625140]
    %v912 = vld.sshfl [vmem:[#allocation1 + $0x20] sm:$0xff pattern:$0x73625140]
    %913 = vst [vmem:[#allocation1] ss:$4 sm:$0xff] %v768
    %914 = vst [vmem:[%s857] ss:$4 sm:$0xff] %v769
    %915 = vst [vmem:[%s859] ss:$4 sm:$0xff] %v770
    %916 = vst [vmem:[%s861] ss:$4 sm:$0xff] %v771
    %917 = vst [vmem:[%s863] ss:$4 sm:$0xff] %v772
    %918 = vst [vmem:[%s865] ss:$4 sm:$0xff] %v773
    %919 = vst [vmem:[%s867] ss:$4 sm:$0xff] %v774
    %920 = vst [vmem:[%s869] ss:$4 sm:$0xff] %v775
    %v921 = vld.sshfl [vmem:[#allocation1] sm:$0xff pattern:$0x73625140]
    %v922 = vld.sshfl [vmem:[#allocation1 + $0x20] sm:$0xff pattern:$0x73625140]
    %923 = vst [vmem:[#allocation1] ss:$4 sm:$0xff] %v776
    %924 = vst [vmem:[%s857] ss:$4 sm:$0xff] %v777
    %925 = vst [vmem:[%s859] ss:$4 sm:$0xff] %v778
    %926 = vst [vmem:[%s861] ss:$4 sm:$0xff] %v779
    %927 = vst [vmem:[%s863] ss:$4 sm:$0xff] %v780
    %928 = vst [vmem:[%s865] ss:$4 sm:$0xff] %v781
    %929 = vst [vmem:[%s867] ss:$4 sm:$0xff] %v782
    %930 = vst [vmem:[%s869] ss:$4 sm:$0xff] %v783
    %v931 = vld.sshfl [vmem:[#allocation1] sm:$0xff pattern:$0x73625140]
    %v932 = vld.sshfl [vmem:[#allocation1 + $0x20] sm:$0xff pattern:$0x73625140]
    %933 = vst [vmem:[#allocation1] ss:$4 sm:$0xff] %v784
    %934 = vst [vmem:[%s857] ss:$4 sm:$0xff] %v785
    %935 = vst [vmem:[%s859] ss:$4 sm:$0xff] %v786
    %936 = vst [vmem:[%s861] ss:$4 sm:$0xff] %v787
    %937 = vst [vmem:[%s863] ss:$4 sm:$0xff] %v788
    %938 = vst [vmem:[%s865] ss:$4 sm:$0xff] %v789
    %939 = vst [vmem:[%s867] ss:$4 sm:$0xff] %v790
    %940 = vst [vmem:[%s869] ss:$4 sm:$0xff] %v791
    %v941 = vld.sshfl [vmem:[#allocation1] sm:$0xff pattern:$0x73625140]
    %v942 = vld.sshfl [vmem:[#allocation1 + $0x20] sm:$0xff pattern:$0x73625140]
    %v959 = vmul.f32 %v712, %v871
    %v960 = vmul.f32 %v713, %v872
    %v961 = vmul.f32 %v714, %v881
    %v962 = vmul.f32 %v715, %v882
    %v963 = vmul.f32 %v716, %v891
    %v964 = vmul.f32 %v717, %v892
    %v965 = vmul.f32 %v718, %v901
    %v966 = vmul.f32 %v719, %v902
    %v967 = vmul.f32 %v720, %v911
    %v968 = vmul.f32 %v721, %v912
    %v969 = vmul.f32 %v722, %v921
    %v970 = vmul.f32 %v723, %v922
    %v971 = vmul.f32 %v724, %v931
    %v972 = vmul.f32 %v725, %v932
    %v973 = vmul.f32 %v726, %v941
    %v974 = vmul.f32 %v727, %v942
    %v975 = vsel %vm420, %v959, 0.0
    %v976 = vsel %vm420, %v961, 0.0
    %v977 = vadd.f32 %v975, %v976
    %v978 = vsel %vm420, %v963, 0.0
    %v979 = vadd.f32 %v977, %v978
    %v980 = vsel %vm420, %v965, 0.0
    %v981 = vadd.f32 %v979, %v980
    %v982 = vsel %vm420, %v967, 0.0
    %v983 = vadd.f32 %v981, %v982
    %v984 = vsel %vm420, %v969, 0.0
    %v985 = vadd.f32 %v983, %v984
    %v986 = vsel %vm420, %v971, 0.0
    %v987 = vadd.f32 %v985, %v986
    %v988 = vsel %vm420, %v973, 0.0
    %v989 = vadd.f32 %v987, %v988
    %v990 = vsel %vm420, %v960, 0.0
    %v991 = vsel %vm420, %v962, 0.0
    %v992 = vadd.f32 %v990, %v991
    %v993 = vsel %vm420, %v964, 0.0
    %v994 = vadd.f32 %v992, %v993
    %v995 = vsel %vm420, %v966, 0.0
    %v996 = vadd.f32 %v994, %v995
    %v997 = vsel %vm420, %v968, 0.0
    %v998 = vadd.f32 %v996, %v997
    %v999 = vsel %vm420, %v970, 0.0
    %v1000 = vadd.f32 %v998, %v999
    %v1001 = vsel %vm420, %v972, 0.0
    %v1002 = vadd.f32 %v1000, %v1001
    %v1003 = vsel %vm420, %v974, 0.0
    %v1004 = vadd.f32 %v1002, %v1003
    %v1005 = vpack.c.bf16 %v1004, %v989
    %v1006 = vld [vmem:[%s7] sm:$0xf]
    %v1007 = vld [vmem:[%s7 + $0x4] sm:$0xf]
    %v1008 = vld [vmem:[%s7 + $0x8] sm:$0xf]
    %v1009 = vld [vmem:[%s7 + $0xc] sm:$0xf]
    %v1010 = vld [vmem:[%s7 + $0x10] sm:$0xf]
    %v1011 = vld [vmem:[%s7 + $0x14] sm:$0xf]
    %v1012 = vld [vmem:[%s7 + $0x18] sm:$0xf]
    %v1013 = vld [vmem:[%s7 + $0x1c] sm:$0xf]
    %v1014 = vld [vmem:[#allocation5] sm:$0xf]
    %v1015 = vld [vmem:[#allocation5 + $0x4] sm:$0xf]
    %v1018 = vunpack.c.l.b16 %v1014
    %v1019 = vunpack.c.l.b16 %v1015
    %v1020 = vpack.c.b16 %v1019, %v1018
    %vm1022 = vcmask 130048
    %v1024 = vsel %vm1022, %v143, 0
    %1026 = vmatpush.bf16.msra.mxu0 0
    %1027 = vmatpush.bf16.msra.mxu0 0
    %1028 = vmatpush.bf16.msra.mxu0 0
    %1029 = vmatpush.bf16.msra.mxu0 0
    %1030 = vmatpush.bf16.msra.mxu0 0
    %1031 = vmatpush.bf16.msra.mxu0 0
    %1032 = vmatpush.bf16.msra.mxu0 0
    %1033 = vmatpush.bf16.msra.mxu0 %v1020
    %1034 = vmatmul.bf16.gmra.mxu0 %v1024
    %v1035 = vpop.f32.mrf.mxu0
    %v1036 = vadd.f32 0.0, %v1035
    %v1037 = vpop.f32.mrf.mxu0
    %v1038 = vadd.f32 0.0, %v1037
    %1039 = vdwg.mxu0
    %v1048 = vunpack.c.l.b16 %v1006
    %v1049 = vunpack.c.l.b16 %v1007
    %v1050 = vunpack.c.l.b16 %v1008
    %v1051 = vunpack.c.l.b16 %v1009
    %v1052 = vunpack.c.l.b16 %v1010
    %v1053 = vunpack.c.l.b16 %v1011
    %v1054 = vunpack.c.l.b16 %v1012
    %v1055 = vunpack.c.l.b16 %v1013
    %v1056 = vpack.c.b16 %v1049, %v1048
    %v1057 = vpack.c.b16 %v1051, %v1050
    %v1058 = vpack.c.b16 %v1053, %v1052
    %v1059 = vpack.c.b16 %v1055, %v1054
    %v1065 = vsel %vm420, %v1005, 0
    %1067 = vmatpush.bf16.msra.mxu0 0
    %1068 = vmatpush.bf16.msra.mxu0 0
    %1069 = vmatpush.bf16.msra.mxu0 0
    %1070 = vmatpush.bf16.msra.mxu0 0
    %1071 = vmatpush.bf16.msra.mxu0 %v1059
    %1072 = vmatpush.bf16.msra.mxu0 %v1058
    %1073 = vmatpush.bf16.msra.mxu0 %v1057
    %1074 = vmatpush.bf16.msra.mxu0 %v1056
    %1075 = vmatmul.bf16.gmra.mxu0 %v1065
    %v1076 = vpop.f32.mrf.mxu0
    %v1077 = vadd.f32 %v1036, %v1076
    %v1078 = vpop.f32.mrf.mxu0
    %v1079 = vadd.f32 %v1038, %v1078
    %1080 = vdwg.mxu0
    %v1081 = vld [vmem:[%s10] sm:$0x1]
    %v1083 = vperm.slane %v1081, 0
    %v1085 = vadd.f32 %v1077, %v1083
    %v1086 = vadd.f32 %v1079, %v1083
    %v1087 = vld [vmem:[#allocation7] sm:$0xf]
    %v1088 = vld [vmem:[#allocation7 + $0x4] sm:$0xf]
    %v1089 = vld [vmem:[#allocation7 + $0x8] sm:$0xf]
    %v1090 = vld [vmem:[#allocation7 + $0xc] sm:$0xf]
    %v1091 = vld [vmem:[%s11] sm:$0x1]
    %v1093 = vperm.slane %v1091, 0
    %v1099 = vunpack.c.l.b16 %v1087
    %v1100 = vunpack.c.l.b16 %v1088
    %v1101 = vunpack.c.l.b16 %v1089
    %v1102 = vunpack.c.l.b16 %v1090
    %v1103 = vpack.c.b16 %v1100, %v1099
    %v1104 = vpack.c.b16 %v1102, %v1101
    %1107 = vmatpush.bf16.msra.mxu0 0
    %1108 = vmatpush.bf16.msra.mxu0 0
    %1109 = vmatpush.bf16.msra.mxu0 0
    %1110 = vmatpush.bf16.msra.mxu0 0
    %1111 = vmatpush.bf16.msra.mxu0 0
    %1112 = vmatpush.bf16.msra.mxu0 0
    %1113 = vmatpush.bf16.msra.mxu0 %v1104
    %1114 = vmatpush.bf16.msra.mxu0 %v1103
    %1115 = vmatmul.bf16.gmra.mxu0 %v229
    %v1116 = vpop.f32.mrf.mxu0
    %v1117 = vadd.f32 %v1093, %v1116
    %v1118 = vpop.f32.mrf.mxu0
    %v1119 = vadd.f32 %v1093, %v1118
    %1120 = vdwg.mxu0
    %v1121 = vadd.f32 %v1085, %v1117
    %v1122 = vadd.f32 %v1086, %v1119
    %v1123 = vxor.u32 %v1121, 2147483648
    %v1124 = vxor.u32 %v1122, 2147483648
    %v1125 = vmul.f32 %v1123, 1.442695
    %v1126 = vpow.pop %v1125
    %v1127 = vmul.f32 %v1124, 1.442695
    %v1128 = vpow.pop %v1127
    %v1129 = vadd.f32 %v1126, 1.0
    %v1130 = vadd.f32 %v1128, 1.0
    %v1131 = vrcp.pop %v1129
    %v1132 = vmul.f32 %v1129, %v1131
    %v1133 = vsub.f32 1.0, %v1132
    %v1134 = vmul.f32 %v1131, %v1133
    %v1135 = vadd.f32 %v1131, %v1134
    %vm1136 = vweird.f32 %v1129
    %vm1137 = vweird.f32 %v1131
    %vm1138 = vmor %vm1136, %vm1137
    %v1139 = vsel %vm1138, %v1131, %v1135
    %v1140 = vand.u32 2147483647, %v1129
    %vm1141 = vcmp.eq.f32.partialorder %v1140, 8.507059e+37
    %v1142 = vand.u32 %v1129, 2147483648
    %v1143 = vor.u32 1.1754944e-38, %v1142
    %v1144 = vsel %vm1141, %v1143, %v1139
    %v1145 = vmul.f32 1.0, %v1144
    %v1146 = vrcp.pop %v1130
    %v1147 = vmul.f32 %v1130, %v1146
    %v1148 = vsub.f32 1.0, %v1147
    %v1149 = vmul.f32 %v1146, %v1148
    %v1150 = vadd.f32 %v1146, %v1149
    %vm1151 = vweird.f32 %v1130
    %vm1152 = vweird.f32 %v1146
    %vm1153 = vmor %vm1151, %vm1152
    %v1154 = vsel %vm1153, %v1146, %v1150
    %v1155 = vand.u32 2147483647, %v1130
    %vm1156 = vcmp.eq.f32.partialorder %v1155, 8.507059e+37
    %v1157 = vand.u32 %v1130, 2147483648
    %v1158 = vor.u32 1.1754944e-38, %v1157
    %v1159 = vsel %vm1156, %v1158, %v1154
    %v1160 = vmul.f32 1.0, %v1159
    %1163 = vrot.lane.b32.xlu0 %v1117, 64
    %v1164 = vpop.permute.xlu0 %1163
    %1165 = vrot.lane.b32.xlu0 %v1119, 64
    %v1166 = vpop.permute.xlu0 %1165
    %v1169 = vmul.f32 %v1145, %v1164
    %v1170 = vmul.f32 %v1160, %v1166
    %1173 = vrot.lane.b32.xlu0 %v1169, 64
    %v1174 = vpop.permute.xlu0 %1173
    %1175 = vrot.lane.b32.xlu0 %v1170, 64
    %v1176 = vpop.permute.xlu0 %1175
    %v1179 = vadd.f32 %v1085, %v1174
    %v1180 = vadd.f32 %v1086, %v1176
    %v1181 = vtanh.pop %v1179
    %v1182 = vtanh.pop %v1180
    %v1183 = vsub.f32 1.0, %v1145
    %v1184 = vsub.f32 1.0, %v1160
    %1187 = vrot.lane.b32.xlu0 %v1181, 96
    %v1188 = vpop.permute.xlu0 %1187
    %1189 = vrot.lane.b32.xlu0 %v1182, 96
    %v1190 = vpop.permute.xlu0 %1189
    %v1193 = vmul.f32 %v1183, %v1188
    %v1194 = vmul.f32 %v1184, %v1190
    %1197 = vrot.lane.b32.xlu0 %v144, 32
    %v1198 = vpop.permute.xlu0 %1197
    %1199 = vrot.lane.b32.xlu0 %v145, 32
    %v1200 = vpop.permute.xlu0 %1199
    %v1203 = vmul.f32 %v1145, %v1198
    %v1204 = vmul.f32 %v1160, %v1200
    %v1205 = vadd.f32 %v1193, %v1203
    %v1206 = vadd.f32 %v1194, %v1204
    %v1207 = vpack.c.bf16 %v1206, %v1205
    %v1208 = vld [vmem:[#allocation8] sm:$0xf]
    %v1209 = vld [vmem:[#allocation8 + $0x4] sm:$0xf]
    %v1210 = vld [vmem:[#allocation8 + $0x8] sm:$0xf]
    %v1211 = vld [vmem:[#allocation8 + $0xc] sm:$0xf]
    %v1212 = vld [vmem:[%s13] sm:$0x1]
    %v1214 = vperm.slane %v1212, 0
    %1217 = vrot.lane.b32.xlu0 %v1207, 96
    %v1218 = vpop.permute.xlu0 %1217
    %v1223 = vunpack.c.l.b16 %v1208
    %v1224 = vunpack.c.l.b16 %v1209
    %v1225 = vunpack.c.l.b16 %v1210
    %v1226 = vunpack.c.l.b16 %v1211
    %v1227 = vpack.c.b16 %v1224, %v1223
    %v1228 = vpack.c.b16 %v1226, %v1225
    %v1232 = vsel %vm227, %v1218, 0
    %1234 = vmatpush.bf16.msra.mxu0 0
    %1235 = vmatpush.bf16.msra.mxu0 0
    %1236 = vmatpush.bf16.msra.mxu0 0
    %1237 = vmatpush.bf16.msra.mxu0 0
    %1238 = vmatpush.bf16.msra.mxu0 0
    %1239 = vmatpush.bf16.msra.mxu0 0
    %1240 = vmatpush.bf16.msra.mxu0 %v1228
    %1241 = vmatpush.bf16.msra.mxu0 %v1227
    %1242 = vmatmul.bf16.gmra.mxu0 %v1232
    %v1243 = vpop.f32.mrf.mxu0
    %v1244 = vadd.f32 %v1214, %v1243
    %v1245 = vpop.f32.mrf.mxu0
    %v1246 = vadd.f32 %v1214, %v1245
    %1247 = vdwg.mxu0
    %1248 = vmax.xlane.f32.xlu0 %v1244
    %v1249 = vpop.xlane.xlu0 %1248
    %1250 = vmax.xlane.f32.xlu0 %v1246
    %v1251 = vpop.xlane.xlu0 %1250
    %v1252 = vsub.f32 %v1244, %v1249
    %v1253 = vsub.f32 %v1246, %v1251
    %v1254 = vmul.f32 %v1252, 1.442695
    %v1255 = vpow.pop %v1254
    %v1256 = vmul.f32 %v1253, 1.442695
    %v1257 = vpow.pop %v1256
    %1258 = vadd.xlane.f32.xlu0 %v1255
    %v1259 = vpop.xlane.xlu0 %1258
    %1260 = vadd.xlane.f32.xlu0 %v1257
    %v1261 = vpop.xlane.xlu0 %1260
    %v1262 = vlog2.pop %v1259
    %v1263 = vmul.f32 %v1262, 0.6931472
    %v1264 = vlog2.pop %v1261
    %v1265 = vmul.f32 %v1264, 0.6931472
    %v1266 = vadd.f32 %v1263, %v1249
    %v1267 = vadd.f32 %v1265, %v1251
    %v1268 = vsub.f32 %v1244, %v1266
    %v1269 = vsub.f32 %v1246, %v1267
    %1270 = vst [vmem:[#allocation10] sm:$0xff] %v1268
    %1271 = vst [vmem:[#allocation10 + $0x8] sm:$0xff] %v1269
    %1274 = vrot.lane.b32.xlu0 %v1205, 96
    %v1275 = vpop.permute.xlu0 %1274
    %1276 = vrot.lane.b32.xlu0 %v1206, 96
    %v1277 = vpop.permute.xlu0 %1276
    %1280 = vst.msk [vmem:[#allocation11] sm:$0xff] %vm227, %v1275
    %1281 = vst.msk [vmem:[#allocation11 + $0x8] sm:$0xff] %vm227, %v1277
    %vm1282 = vcmask 7168
    %1283 = vst.msk [vmem:[#allocation13] sm:$0xff] %vm1282, %v712
    %1284 = vst.msk [vmem:[#allocation13 + $0x8] sm:$0xff] %vm1282, %v713
    %1285 = vst.msk [vmem:[#allocation13 + $0x10] sm:$0xff] %vm1282, %v714
    %1286 = vst.msk [vmem:[#allocation13 + $0x18] sm:$0xff] %vm1282, %v715
    %1287 = vst.msk [vmem:[#allocation13 + $0x20] sm:$0xff] %vm1282, %v716
    %1288 = vst.msk [vmem:[#allocation13 + $0x28] sm:$0xff] %vm1282, %v717
    %1289 = vst.msk [vmem:[#allocation13 + $0x30] sm:$0xff] %vm1282, %v718
    %1290 = vst.msk [vmem:[#allocation13 + $0x38] sm:$0xff] %vm1282, %v719
    %1291 = vst.msk [vmem:[#allocation13 + $0x40] sm:$0xff] %vm1282, %v720
    %1292 = vst.msk [vmem:[#allocation13 + $0x48] sm:$0xff] %vm1282, %v721
    %1293 = vst.msk [vmem:[#allocation13 + $0x50] sm:$0xff] %vm1282, %v722
    %1294 = vst.msk [vmem:[#allocation13 + $0x58] sm:$0xff] %vm1282, %v723
    %1295 = vst.msk [vmem:[#allocation13 + $0x60] sm:$0xff] %vm1282, %v724
    %1296 = vst.msk [vmem:[#allocation13 + $0x68] sm:$0xff] %vm1282, %v725
    %1297 = vst.msk [vmem:[#allocation13 + $0x70] sm:$0xff] %vm1282, %v726
    %1298 = vst.msk [vmem:[#allocation13 + $0x78] sm:$0xff] %vm1282, %v727
    // Predicated region
    $region74: #{tpu_custom_call.1} parent=1 // pred_check
      _
    $region75: #{tpu_custom_call.1} parent=1 // pred_check_branch
      %1300 = sbr.rel (0) target = $region77
    $region76: #{tpu_custom_call.1} parent=1 // pred_region
      %1302 = vsyncadd [#allocation4], 224
      %s1303 = sshll.u32 [#allocation10], 4
      %s1304 = int_to_ptr.vmem [resolvable:$true] %s1303
      %s1305 = sshll.u32 %s14, 4
      %s1306 = int_to_ptr.hbm [resolvable:$true] %s1305
      %1311 = dma.vmem_to_hbm [thread:$0]  %s1304, 32, %s1306, [#allocation4], 32, 32, 2
    $region77: #{tpu_custom_call.1} parent=1 // pred_fallthru
      _
    // Predicated region
    $region78: #{tpu_custom_call.1} parent=1 // pred_check
      _
    $region79: #{tpu_custom_call.1} parent=1 // pred_check_branch
      %1313 = sbr.rel (0) target = $region81
    $region80: #{tpu_custom_call.1} parent=1 // pred_region
      %1315 = vsyncadd [#allocation12], 224
      %s1316 = sshll.u32 [#allocation11], 4
      %s1317 = int_to_ptr.vmem [resolvable:$true] %s1316
      %s1318 = sshll.u32 %s15, 4
      %s1319 = int_to_ptr.hbm [resolvable:$true] %s1318
      %1324 = dma.vmem_to_hbm [thread:$0]  %s1317, 32, %s1319, [#allocation12], 32, 32, 2
    $region81: #{tpu_custom_call.1} parent=1 // pred_fallthru
      _
    // Predicated region
    $region82: #{tpu_custom_call.1} parent=1 // pred_check
      _
    $region83: #{tpu_custom_call.1} parent=1 // pred_check_branch
      %1326 = sbr.rel (0) target = $region85
    $region84: #{tpu_custom_call.1} parent=1 // pred_region
      // Predicated region
      $region86: #{tpu_custom_call.1} parent=84 // pred_check
        _
      $region87: #{tpu_custom_call.1} parent=84 // pred_check_branch
        %1328 = sbr.rel (0) target = $region89
      $region88: #{tpu_custom_call.1} parent=84 // pred_region
        // Predicated region
        $region90: #{tpu_custom_call.1} parent=88 // pred_check
          _
        $region91: #{tpu_custom_call.1} parent=88 // pred_check_branch
          %1330 = sbr.rel target = $region93
        $region92: #{tpu_custom_call.1} parent=88 // pred_region
          // Predicated region
          $region105: #{tpu_custom_call.1} parent=92 // pred_check
            _
          $region106: #{tpu_custom_call.1} parent=92 // pred_check_branch
            %1360 = sbr.rel (0) target = $region108
          $region107: #{tpu_custom_call.1} parent=92 // pred_region
            loop: start=0, step=1, limit=1
            $region109: #{tpu_custom_call.1} parent=107 // loop_pre_header
              _
            $region110: #{tpu_custom_call.1} parent=107 // loop_header
              %s1362 = sphi 0, %s1366
              %p1363 = scmp.ge.s32.totalorder %s1362, 1
              %s1367 = sphi [#allocation13], [#allocation13]
              %s1368 = sphi %s16, %s16
            $region111: #{tpu_custom_call.1} parent=107 // loop_header_branch
              %1365 = sbr.rel (%p1363) target = $region115
            $region112: #{tpu_custom_call.1} parent=107 // loop_body
              _
            $region113: #{tpu_custom_call.1} parent=107 // loop_footer
              %s1366 = sadd.s32 1, %s1362
            $region114: #{tpu_custom_call.1} parent=107 // loop_footer_branch
              %1361 = sbr.rel target = $region110
            $region115: #{tpu_custom_call.1} parent=107 // loop_exit
              _
            %s1370 = ssub.s32 4, 1
            loop: start=0, step=1, limit=1
            $region116: #{tpu_custom_call.1} parent=107 // loop_pre_header
              _
            $region117: #{tpu_custom_call.1} parent=107 // loop_header
              %s1372 = sphi 0, %s1376
              %p1373 = scmp.ge.s32.totalorder %s1372, 1
              %s1377 = sphi [#allocation13], [#allocation13]
              %s1378 = sphi %s16, %s16
            $region118: #{tpu_custom_call.1} parent=107 // loop_header_branch
              %1375 = sbr.rel (%p1373) target = $region122
            $region119: #{tpu_custom_call.1} parent=107 // loop_body
              %v1379 = vld [vmem:[%s1377] sm:%s1370]
              %1380 = vst [vmem:[%s1378] sm:%s1370] %v1379
              %v1381 = vld [vmem:[%s1377 + $0x10] sm:%s1370]
              %1382 = vst [vmem:[%s1378 + $0x2] sm:%s1370] %v1381
              %v1383 = vld [vmem:[%s1377 + $0x20] sm:%s1370]
              %1384 = vst [vmem:[%s1378 + $0x4] sm:%s1370] %v1383
              %v1385 = vld [vmem:[%s1377 + $0x30] sm:%s1370]
              %1386 = vst [vmem:[%s1378 + $0x6] sm:%s1370] %v1385
              %v1387 = vld [vmem:[%s1377 + $0x40] sm:%s1370]
              %1388 = vst [vmem:[%s1378 + $0x8] sm:%s1370] %v1387
              %v1389 = vld [vmem:[%s1377 + $0x50] sm:%s1370]
              %1390 = vst [vmem:[%s1378 + $0xa] sm:%s1370] %v1389
              %v1391 = vld [vmem:[%s1377 + $0x60] sm:%s1370]
              %1392 = vst [vmem:[%s1378 + $0xc] sm:%s1370] %v1391
              %v1393 = vld [vmem:[%s1377 + $0x70] sm:%s1370]
              %1394 = vst [vmem:[%s1378 + $0xe] sm:%s1370] %v1393
            $region120: #{tpu_custom_call.1} parent=107 // loop_footer
              %s1376 = sadd.s32 1, %s1372
            $region121: #{tpu_custom_call.1} parent=107 // loop_footer_branch
              %1371 = sbr.rel target = $region117
            $region122: #{tpu_custom_call.1} parent=107 // loop_exit
              _
          $region108: #{tpu_custom_call.1} parent=92 // pred_fallthru
            _
        $region93: #{tpu_custom_call.1} parent=88 // pred_fallthru
          _
        // Predicated region
        $region94: #{tpu_custom_call.1} parent=88 // pred_check
          _
        $region95: #{tpu_custom_call.1} parent=88 // pred_check_branch
          %1332 = sbr.rel (0) target = $region97
        $region96: #{tpu_custom_call.1} parent=88 // pred_region
          %s1334 = ssub.s32 4, 1
          loop: start=0, step=1, limit=1
          $region98: #{tpu_custom_call.1} parent=96 // loop_pre_header
            _
          $region99: #{tpu_custom_call.1} parent=96 // loop_header
            %s1336 = sphi 0, %s1340
            %p1337 = scmp.ge.s32.totalorder %s1336, 1
            %s1341 = sphi [#allocation13], [#allocation13]
            %s1342 = sphi %s16, %s16
          $region100: #{tpu_custom_call.1} parent=96 // loop_header_branch
            %1339 = sbr.rel (%p1337) target = $region104
          $region101: #{tpu_custom_call.1} parent=96 // loop_body
            %v1343 = vld [vmem:[%s1341] sm:%s1334]
            %1344 = vst [vmem:[%s1342] sm:%s1334] %v1343
            %v1345 = vld [vmem:[%s1341 + $0x10] sm:%s1334]
            %1346 = vst [vmem:[%s1342 + $0x2] sm:%s1334] %v1345
            %v1347 = vld [vmem:[%s1341 + $0x20] sm:%s1334]
            %1348 = vst [vmem:[%s1342 + $0x4] sm:%s1334] %v1347
            %v1349 = vld [vmem:[%s1341 + $0x30] sm:%s1334]
            %1350 = vst [vmem:[%s1342 + $0x6] sm:%s1334] %v1349
            %v1351 = vld [vmem:[%s1341 + $0x40] sm:%s1334]
            %1352 = vst [vmem:[%s1342 + $0x8] sm:%s1334] %v1351
            %v1353 = vld [vmem:[%s1341 + $0x50] sm:%s1334]
            %1354 = vst [vmem:[%s1342 + $0xa] sm:%s1334] %v1353
            %v1355 = vld [vmem:[%s1341 + $0x60] sm:%s1334]
            %1356 = vst [vmem:[%s1342 + $0xc] sm:%s1334] %v1355
            %v1357 = vld [vmem:[%s1341 + $0x70] sm:%s1334]
            %1358 = vst [vmem:[%s1342 + $0xe] sm:%s1334] %v1357
          $region102: #{tpu_custom_call.1} parent=96 // loop_footer
            %s1340 = sadd.s32 1, %s1336
          $region103: #{tpu_custom_call.1} parent=96 // loop_footer_branch
            %1335 = sbr.rel target = $region99
          $region104: #{tpu_custom_call.1} parent=96 // loop_exit
            _
        $region97: #{tpu_custom_call.1} parent=88 // pred_fallthru
          _
      $region89: #{tpu_custom_call.1} parent=84 // pred_fallthru
        _
      %1395 = vnop
    $region85: #{tpu_custom_call.1} parent=1 // pred_fallthru
      _
    // Predicated region
    $region123: #{tpu_custom_call.1} parent=1 // pred_check
      _
    $region124: #{tpu_custom_call.1} parent=1 // pred_check_branch
      %1397 = sbr.rel (0) target = $region126
    $region125: #{tpu_custom_call.1} parent=1 // pred_region
      %1399 = dma.done [#allocation4], 256
    $region126: #{tpu_custom_call.1} parent=1 // pred_fallthru
      _
    // Predicated region
    $region127: #{tpu_custom_call.1} parent=1 // pred_check
      _
    $region128: #{tpu_custom_call.1} parent=1 // pred_check_branch
      %1401 = sbr.rel (0) target = $region130
    $region129: #{tpu_custom_call.1} parent=1 // pred_region
      %1403 = dma.done [#allocation12], 256
    $region130: #{tpu_custom_call.1} parent=1 // pred_fallthru
      _
    // Predicated region
    $region131: #{tpu_custom_call.1} parent=1 // pred_check
      _
    $region132: #{tpu_custom_call.1} parent=1 // pred_check_branch
      %1405 = sbr.rel (0) target = $region134
    $region133: #{tpu_custom_call.1} parent=1 // pred_region
      _
    $region134: #{tpu_custom_call.1} parent=1 // pred_fallthru
      _
    %1406 = vsyncpa [#allocation3], 1
    %1407 = vsyncpa [#allocation6], 1
    %1408 = vsyncpa [#allocation9], 1
    %1409 = vsyncpa [#allocation4], 1
    %1410 = vsyncpa [#allocation12], 1

</llo_original>
